<compile_context>
chip_gen: v5e
topology: v5e:2x2
jax: 0.10.0
libtpu: 0.0.40
codegen_flags: <defaults>
</compile_context>

<pallas_src>
import functools

import jax
import jax.numpy as jnp
from jax.experimental import pallas as pl
from jax.experimental.pallas import tpu as pltpu

LANES = 128          # channel axis is padded to one full lane register
_NEG_SLOPE = 0.2
_BN_EPS = 1e-5


# ----------------------------------------------------------------------------
# Fused kernel: the whole Discriminator_latent forward for ONE sample
# ----------------------------------------------------------------------------
def _disc_kernel(x_ref, w_ref, scale_ref, shift_ref, feat_ref, cls_ref,
                 buf_a, buf_b, *, seq_len, n_feat_layers, neg_slope):
    # x_ref:     (seq_pad, 128) f32, rows: [zero-pad, x[0..L-1], zero-pad, extra zeros]
    # w_ref:     (n_feat_layers+1, 4, 128, 128) bf16  -- W_k^T padded to 128x128
    # scale_ref: (8, 128) f32   BN scale per layer (1 on padding lanes/rows)
    # shift_ref: (8, 128) f32   BN shift + folded conv bias (0 on padding lanes)
    # feat_ref:  (1, 4, 128) f32   features output (lane-dense)
    # cls_ref:   (1, 1, 128) f32   sigmoid logits (lane 0 meaningful)
    # buf_a/b:   (seq_len//2 + 2, 128) f32 VMEM ping-pong activation buffers
    bufs = (buf_a, buf_b)
    src = x_ref
    cur_len = seq_len

    for li in range(n_feat_layers):
        out_len = cur_len // 2
        dst = bufs[li % 2]

        # Conv1d(k=4, s=2, p=1) as 4 strided-tap matmuls on the MXU (bf16 in, f32 acc)
        acc = jnp.zeros((out_len, LANES), jnp.float32)
        for k in range(4):
            xk = src[pl.ds(k, out_len, stride=2), :]          # (out_len, 128) f32
            acc = acc + jnp.dot(xk.astype(jnp.bfloat16), w_ref[li, k, :, :],
                                preferred_element_type=jnp.float32)

        # fused (conv bias + BatchNorm eval) scale/shift + LeakyReLU, f32 epilogue
        acc = acc * scale_ref[pl.ds(li, 1), :] + shift_ref[pl.ds(li, 1), :]
        acc = jnp.where(acc > 0, acc, neg_slope * acc)

        # stash with one zero pad row on each side for the next layer's taps
        dst[...] = jnp.zeros_like(dst)
        dst[pl.ds(1, out_len), :] = acc

        if li == n_feat_layers - 1:
            feat_ref[...] = acc.reshape(feat_ref.shape)        # lane-dense feature out

        src = dst
        cur_len = out_len

    # classifier: Conv1d(ndf*16, 1, 4, 1, 0) + Sigmoid over the length-4 feature map
    acc = jnp.zeros((1, LANES), jnp.float32)
    for k in range(4):
        xk = src[pl.ds(1 + k, 1), :]
        acc = acc + jnp.dot(xk.astype(jnp.bfloat16),
                            w_ref[n_feat_layers, k, :, :],
                            preferred_element_type=jnp.float32)
    acc = acc + shift_ref[pl.ds(n_feat_layers, 1), :]          # classifier bias
    acc = jnp.clip(acc, -30.0, 30.0)                           # guard exp overflow
    sig = pl.reciprocal(1.0 + jnp.exp(-acc), approx=True)      # sigmoid, recip on EUP
    cls_ref[...] = sig.reshape(cls_ref.shape)


# ----------------------------------------------------------------------------
# Parameter packing (layout plumbing only; done once per call)
# ----------------------------------------------------------------------------
def _prep_inputs(params, x):
    N, c_in, L = x.shape
    seq_pad = ((L + 2 + 7) // 8) * 8                     # per-sample rows, mult of 8

    # padded input: rows = positions (1 zero pad each side), lanes = channels
    x_pad = jnp.zeros((N, seq_pad, LANES), jnp.float32)
    x_pad = x_pad.at[:, 1:L + 1, :c_in].set(jnp.transpose(x, (0, 2, 1)))
    x_pad = x_pad.reshape(N * seq_pad, LANES)

    n_feat = len(params["features"])
    n_layers = n_feat + 1
    w_stack = jnp.zeros((n_layers, 4, LANES, LANES), jnp.float32)
    scale = jnp.ones((8, LANES), jnp.float32)
    shift = jnp.zeros((8, LANES), jnp.float32)

    for li, layer in enumerate(params["features"]):
        w = layer["w"]                                   # (Cout, Cin, 4)
        co, ci, _ = w.shape
        # w_stack[li, k, ci, co] = w[co, ci, k]
        w_stack = w_stack.at[li, :, :ci, :co].set(jnp.transpose(w, (2, 1, 0)))
        s = layer["gamma"] / jnp.sqrt(layer["var"] + _BN_EPS)
        t = layer["beta"] - layer["mean"] * s + layer["b"] * s   # conv bias folded in
        scale = scale.at[li, :co].set(s)
        shift = shift.at[li, :co].set(t)

    wc = params["classifier"]["w"]                       # (1, Cfeat, 4)
    cfeat = wc.shape[1]
    w_stack = w_stack.at[n_feat, :, :cfeat, :1].set(jnp.transpose(wc, (2, 1, 0)))
    shift = shift.at[n_feat, 0].set(params["classifier"]["b"][0])

    return x_pad, w_stack.astype(jnp.bfloat16), scale, shift, seq_pad, cfeat


# ----------------------------------------------------------------------------
# Forward
# ----------------------------------------------------------------------------
def discriminator_latent_forward(params, x):
    N, c_in, L = x.shape
    n_feat = len(params["features"])
    feat_len = L // (2 ** n_feat)
    assert feat_len == 4, "classifier Conv1d(.,1,4,1,0) needs feature length 4 (isize=128)"
    cfeat = params["classifier"]["w"].shape[1]
    assert cfeat <= LANES and c_in <= LANES, \
        "channel counts > 128 need channel tiling"  # TODO(synk): tile channels for large ndf

    x_pad, w_stack, scale, shift, seq_pad, cfeat = _prep_inputs(params, x)

    kernel = functools.partial(_disc_kernel, seq_len=L, n_feat_layers=n_feat,
                               neg_slope=_NEG_SLOPE)
    buf_rows = L // 2 + 2

    feat_p, cls_p = pl.pallas_call(
        kernel,
        out_shape=(jax.ShapeDtypeStruct((N, feat_len, LANES), jnp.float32),
                   jax.ShapeDtypeStruct((N, 1, LANES), jnp.float32)),
        grid=(N,),
        in_specs=[
            pl.BlockSpec((seq_pad, LANES), lambda n: (n, 0)),
            pl.BlockSpec((n_feat + 1, 4, LANES, LANES), lambda n: (0, 0, 0, 0)),
            pl.BlockSpec((8, LANES), lambda n: (0, 0)),
            pl.BlockSpec((8, LANES), lambda n: (0, 0)),
        ],
        out_specs=(
            pl.BlockSpec((1, feat_len, LANES), lambda n: (n, 0, 0)),
            pl.BlockSpec((1, 1, LANES), lambda n: (n, 0, 0)),
        ),
        scratch_shapes=[
            pltpu.VMEM((buf_rows, LANES), jnp.float32),
            pltpu.VMEM((buf_rows, LANES), jnp.float32),
        ],
        compiler_params=pltpu.CompilerParams(
            dimension_semantics=("parallel",)),
    )(x_pad, w_stack, scale, shift)

    features = jnp.transpose(feat_p[:, :, :cfeat], (0, 2, 1))   # (N, ndf*16, 4), NCL
    classifier = cls_p[:, 0, 0]                                 # view(-1,1).squeeze(1)
    return classifier, features


# ----------------------------------------------------------------------------
# Deterministic parameters mirroring the PyTorch module (eval-mode BN)
# ----------------------------------------------------------------------------
def make_params(key, ndf):
    chans = [1, ndf, ndf * 2, ndf * 4, ndf * 8, ndf * 16]
    params = {"features": [], "classifier": {}}
    for li in range(5):
        key, kw, kb, kg, kbe, km, kv = jax.random.split(key, 7)
        cin, cout = chans[li], chans[li + 1]
        params["features"].append({
            "w": jax.random.normal(kw, (cout, cin, 4), jnp.float32) / jnp.sqrt(cin * 4.0),
            "b": 0.1 * jax.random.normal(kb, (cout,), jnp.float32),   # Conv1d default bias=True
            "gamma": 1.0 + 0.1 * jax.random.normal(kg, (cout,), jnp.float32),
            "beta": 0.1 * jax.random.normal(kbe, (cout,), jnp.float32),
            "mean": 0.1 * jax.random.normal(km, (cout,), jnp.float32),
            "var": 1.0 + 0.1 * jax.random.uniform(kv, (cout,), jnp.float32),
        })
    key, kw, kb = jax.random.split(key, 3)
    cfeat = ndf * 16
    params["classifier"]["w"] = jax.random.normal(kw, (1, cfeat, 4), jnp.float32) / jnp.sqrt(cfeat * 4.0)
    params["classifier"]["b"] = 0.1 * jax.random.normal(kb, (1,), jnp.float32)
    # TODO(synk): BatchNorm1d is applied in eval mode with running statistics; PyTorch
    # train()-mode batch statistics are not reproduced here.
    return params


# ----------------------------------------------------------------------------
# Pure-JAX f32 reference of the same module (for a correctness check in main)
# ----------------------------------------------------------------------------
def _reference_forward(params, x):
    def conv1d(h, w, b, stride, padding):
        y = jax.lax.conv_general_dilated(
            h, w, window_strides=(stride,), padding=[(padding, padding)],
            dimension_numbers=("NCH", "OIH", "NCH"))
        return y + b[None, :, None]

    h = x
    for layer in params["features"]:
        h = conv1d(h, layer["w"], layer["b"], 2, 1)
        s = layer["gamma"] / jnp.sqrt(layer["var"] + _BN_EPS)
        h = s[None, :, None] * (h - layer["mean"][None, :, None]) + layer["beta"][None, :, None]
        h = jnp.where(h > 0, h, _NEG_SLOPE * h)
    feats = h
    y = conv1d(feats, params["classifier"]["w"], params["classifier"]["b"], 1, 0)
    return jax.nn.sigmoid(y).reshape(-1), feats


if __name__ == "__main__":
    N, NDF, ISIZE = 2, 4, 128   # isize=128 -> feature length 4 -> one logit per sample
    key = jax.random.PRNGKey(0)
    key, kx = jax.random.split(key)
    x = jax.random.normal(kx, (N, 1, ISIZE), jnp.float32)      # PyTorch NCL, nc=1
    params = make_params(key, NDF)

    fwd = jax.jit(discriminator_latent_forward)
    classifier, features = jax.block_until_ready(fwd(params, x))

    assert classifier.shape == (N,)
    assert features.shape == (N, NDF * 16, 4)
    assert bool(jnp.all(jnp.isfinite(classifier)))
    assert bool(jnp.all(jnp.isfinite(features)))
    assert bool(jnp.all((classifier >= 0.0) & (classifier <= 1.0)))

    # correctness vs the pure-JAX f32 reference (bf16 matmul inputs -> loose tolerance)
    cls_exp, feat_exp = _reference_forward(params, x)
    feat_err = float(jnp.max(jnp.abs(features - feat_exp))
                     / (jnp.max(jnp.abs(feat_exp)) + 1e-6))
    cls_err = float(jnp.max(jnp.abs(classifier - cls_exp)))
    assert feat_err < 5e-2, f"feature mismatch: {feat_err}"
    assert cls_err < 2e-2, f"classifier mismatch: {cls_err}"

    print("KERNEL_OK")
</pallas_src>

<mosaic_0001>
module attributes {stable_mosaic.version = 11 : i64} {
  func.func @_disc_kernel(%arg0: i32, %arg1: memref<136x128xf32, #tpu.memory_space<vmem>>, %arg2: memref<6x4x128x128xbf16, #tpu.memory_space<vmem>>, %arg3: memref<8x128xf32, #tpu.memory_space<vmem>>, %arg4: memref<8x128xf32, #tpu.memory_space<vmem>>, %arg5: memref<1x4x128xf32, #tpu.memory_space<vmem>>, %arg6: memref<1x1x128xf32, #tpu.memory_space<vmem>>, %arg7: memref<66x128xf32, #tpu.memory_space<vmem>>, %arg8: memref<66x128xf32, #tpu.memory_space<vmem>>) attributes {dimension_semantics = [#tpu.dimension_semantics<parallel>], iteration_bounds = array<i64: 2>, scalar_prefetch = 0 : i64, scratch_operands = 2 : i64, tpu.core_type = #tpu.core_type<tc>, window_params = [{transform_indices = @transform_0, window_bounds = array<i64: 136, 128>}, {pipeline_mode = #tpu.pipeline_mode<synchronous>, transform_indices = @transform_1, window_bounds = array<i64: 6, 4, 128, 128>}, {pipeline_mode = #tpu.pipeline_mode<synchronous>, transform_indices = @transform_2, window_bounds = array<i64: 8, 128>}, {pipeline_mode = #tpu.pipeline_mode<synchronous>, transform_indices = @transform_3, window_bounds = array<i64: 8, 128>}, {transform_indices = @transform_4, window_bounds = array<i64: 1, 4, 128>}, {transform_indices = @transform_5, window_bounds = array<i64: 1, 1, 128>}]} {
    %cst = arith.constant 0.000000e+00 : f32
    %0 = vector.broadcast %cst : f32 to vector<64x128xf32>
    %c0 = arith.constant 0 : index
    %c0_0 = arith.constant 0 : index
    %1 = tpu.strided_load %arg1[%c0, %c0_0] {strides = array<i32: 2, 1>} : memref<136x128xf32, #tpu.memory_space<vmem>>, vector<64x128xf32>
    %2 = arith.truncf %1 : vector<64x128xf32> to vector<64x128xbf16>
    %c0_1 = arith.constant 0 : index
    %c0_2 = arith.constant 0 : index
    %c0_3 = arith.constant 0 : index
    %c0_4 = arith.constant 0 : index
    %3 = vector.load %arg2[%c0_1, %c0_2, %c0_3, %c0_4] : memref<6x4x128x128xbf16, #tpu.memory_space<vmem>>, vector<1x1x128x128xbf16>
    %4 = vector.shape_cast %3 : vector<1x1x128x128xbf16> to vector<128x128xbf16>
    %cst_5 = arith.constant dense<0.000000e+00> : vector<64x128xf32>
    %5 = tpu.matmul %2, %4, %cst_5 {dimension_numbers = #tpu.dot_dimension_numbers<[1], [0], [0], [1], [0, 0, 1, 1], [], []>} : vector<64x128xbf16>, vector<128x128xbf16>, vector<64x128xf32> -> vector<64x128xf32>
    %6 = arith.addf %0, %5 : vector<64x128xf32>
    %c1 = arith.constant 1 : index
    %c0_6 = arith.constant 0 : index
    %7 = tpu.strided_load %arg1[%c1, %c0_6] {strides = array<i32: 2, 1>} : memref<136x128xf32, #tpu.memory_space<vmem>>, vector<64x128xf32>
    %8 = arith.truncf %7 : vector<64x128xf32> to vector<64x128xbf16>
    %c0_7 = arith.constant 0 : index
    %c1_8 = arith.constant 1 : index
    %c0_9 = arith.constant 0 : index
    %c0_10 = arith.constant 0 : index
    %9 = vector.load %arg2[%c0_7, %c1_8, %c0_9, %c0_10] : memref<6x4x128x128xbf16, #tpu.memory_space<vmem>>, vector<1x1x128x128xbf16>
    %10 = vector.shape_cast %9 : vector<1x1x128x128xbf16> to vector<128x128xbf16>
    %cst_11 = arith.constant dense<0.000000e+00> : vector<64x128xf32>
    %11 = tpu.matmul %8, %10, %cst_11 {dimension_numbers = #tpu.dot_dimension_numbers<[1], [0], [0], [1], [0, 0, 1, 1], [], []>} : vector<64x128xbf16>, vector<128x128xbf16>, vector<64x128xf32> -> vector<64x128xf32>
    %12 = arith.addf %6, %11 : vector<64x128xf32>
    %c2 = arith.constant 2 : index
    %c0_12 = arith.constant 0 : index
    %13 = tpu.strided_load %arg1[%c2, %c0_12] {strides = array<i32: 2, 1>} : memref<136x128xf32, #tpu.memory_space<vmem>>, vector<64x128xf32>
    %14 = arith.truncf %13 : vector<64x128xf32> to vector<64x128xbf16>
    %c0_13 = arith.constant 0 : index
    %c2_14 = arith.constant 2 : index
    %c0_15 = arith.constant 0 : index
    %c0_16 = arith.constant 0 : index
    %15 = vector.load %arg2[%c0_13, %c2_14, %c0_15, %c0_16] : memref<6x4x128x128xbf16, #tpu.memory_space<vmem>>, vector<1x1x128x128xbf16>
    %16 = vector.shape_cast %15 : vector<1x1x128x128xbf16> to vector<128x128xbf16>
    %cst_17 = arith.constant dense<0.000000e+00> : vector<64x128xf32>
    %17 = tpu.matmul %14, %16, %cst_17 {dimension_numbers = #tpu.dot_dimension_numbers<[1], [0], [0], [1], [0, 0, 1, 1], [], []>} : vector<64x128xbf16>, vector<128x128xbf16>, vector<64x128xf32> -> vector<64x128xf32>
    %18 = arith.addf %12, %17 : vector<64x128xf32>
    %c3 = arith.constant 3 : index
    %c0_18 = arith.constant 0 : index
    %19 = tpu.strided_load %arg1[%c3, %c0_18] {strides = array<i32: 2, 1>} : memref<136x128xf32, #tpu.memory_space<vmem>>, vector<64x128xf32>
    %20 = arith.truncf %19 : vector<64x128xf32> to vector<64x128xbf16>
    %c0_19 = arith.constant 0 : index
    %c3_20 = arith.constant 3 : index
    %c0_21 = arith.constant 0 : index
    %c0_22 = arith.constant 0 : index
    %21 = vector.load %arg2[%c0_19, %c3_20, %c0_21, %c0_22] : memref<6x4x128x128xbf16, #tpu.memory_space<vmem>>, vector<1x1x128x128xbf16>
    %22 = vector.shape_cast %21 : vector<1x1x128x128xbf16> to vector<128x128xbf16>
    %cst_23 = arith.constant dense<0.000000e+00> : vector<64x128xf32>
    %23 = tpu.matmul %20, %22, %cst_23 {dimension_numbers = #tpu.dot_dimension_numbers<[1], [0], [0], [1], [0, 0, 1, 1], [], []>} : vector<64x128xbf16>, vector<128x128xbf16>, vector<64x128xf32> -> vector<64x128xf32>
    %24 = arith.addf %18, %23 : vector<64x128xf32>
    %c0_24 = arith.constant 0 : index
    %c0_25 = arith.constant 0 : index
    %25 = vector.load %arg3[%c0_24, %c0_25] : memref<8x128xf32, #tpu.memory_space<vmem>>, vector<1x128xf32>
    %26 = vector.broadcast %25 : vector<1x128xf32> to vector<64x128xf32>
    %27 = arith.mulf %24, %26 : vector<64x128xf32>
    %c0_26 = arith.constant 0 : index
    %c0_27 = arith.constant 0 : index
    %28 = vector.load %arg4[%c0_26, %c0_27] : memref<8x128xf32, #tpu.memory_space<vmem>>, vector<1x128xf32>
    %29 = vector.broadcast %28 : vector<1x128xf32> to vector<64x128xf32>
    %30 = arith.addf %27, %29 : vector<64x128xf32>
    %cst_28 = arith.constant 0.000000e+00 : f32
    %31 = vector.broadcast %cst_28 : f32 to vector<64x128xf32>
    %32 = arith.cmpf ogt, %30, %31 : vector<64x128xf32>
    %cst_29 = arith.constant 2.000000e-01 : f32
    %33 = vector.broadcast %cst_29 : f32 to vector<64x128xf32>
    %34 = arith.mulf %33, %30 : vector<64x128xf32>
    %35 = arith.select %32, %30, %34 : vector<64x128xi1>, vector<64x128xf32>
    %cst_30 = arith.constant 0.000000e+00 : f32
    %36 = vector.broadcast %cst_30 : f32 to vector<66x128xf32>
    %c0_31 = arith.constant 0 : index
    %c0_32 = arith.constant 0 : index
    %37 = vector.load %arg7[%c0_31, %c0_32] : memref<66x128xf32, #tpu.memory_space<vmem>>, vector<66x128xf32>
    tpu.vector_store %arg7[%c0_31, %c0_32], %36 {strides = array<i32>} : memref<66x128xf32, #tpu.memory_space<vmem>>, vector<66x128xf32>,
    %c1_33 = arith.constant 1 : index
    %c0_34 = arith.constant 0 : index
    %38 = vector.load %arg7[%c1_33, %c0_34] : memref<66x128xf32, #tpu.memory_space<vmem>>, vector<64x128xf32>
    tpu.vector_store %arg7[%c1_33, %c0_34], %35 {strides = array<i32>} : memref<66x128xf32, #tpu.memory_space<vmem>>, vector<64x128xf32>,
    %cst_35 = arith.constant 0.000000e+00 : f32
    %39 = vector.broadcast %cst_35 : f32 to vector<32x128xf32>
    %c0_36 = arith.constant 0 : index
    %c0_37 = arith.constant 0 : index
    %40 = tpu.strided_load %arg7[%c0_36, %c0_37] {strides = array<i32: 2, 1>} : memref<66x128xf32, #tpu.memory_space<vmem>>, vector<32x128xf32>
    %41 = arith.truncf %40 : vector<32x128xf32> to vector<32x128xbf16>
    %c1_38 = arith.constant 1 : index
    %c0_39 = arith.constant 0 : index
    %c0_40 = arith.constant 0 : index
    %c0_41 = arith.constant 0 : index
    %42 = vector.load %arg2[%c1_38, %c0_39, %c0_40, %c0_41] : memref<6x4x128x128xbf16, #tpu.memory_space<vmem>>, vector<1x1x128x128xbf16>
    %43 = vector.shape_cast %42 : vector<1x1x128x128xbf16> to vector<128x128xbf16>
    %cst_42 = arith.constant dense<0.000000e+00> : vector<32x128xf32>
    %44 = tpu.matmul %41, %43, %cst_42 {dimension_numbers = #tpu.dot_dimension_numbers<[1], [0], [0], [1], [0, 0, 1, 1], [], []>} : vector<32x128xbf16>, vector<128x128xbf16>, vector<32x128xf32> -> vector<32x128xf32>
    %45 = arith.addf %39, %44 : vector<32x128xf32>
    %c1_43 = arith.constant 1 : index
    %c0_44 = arith.constant 0 : index
    %46 = tpu.strided_load %arg7[%c1_43, %c0_44] {strides = array<i32: 2, 1>} : memref<66x128xf32, #tpu.memory_space<vmem>>, vector<32x128xf32>
    %47 = arith.truncf %46 : vector<32x128xf32> to vector<32x128xbf16>
    %c1_45 = arith.constant 1 : index
    %c1_46 = arith.constant 1 : index
    %c0_47 = arith.constant 0 : index
    %c0_48 = arith.constant 0 : index
    %48 = vector.load %arg2[%c1_45, %c1_46, %c0_47, %c0_48] : memref<6x4x128x128xbf16, #tpu.memory_space<vmem>>, vector<1x1x128x128xbf16>
    %49 = vector.shape_cast %48 : vector<1x1x128x128xbf16> to vector<128x128xbf16>
    %cst_49 = arith.constant dense<0.000000e+00> : vector<32x128xf32>
    %50 = tpu.matmul %47, %49, %cst_49 {dimension_numbers = #tpu.dot_dimension_numbers<[1], [0], [0], [1], [0, 0, 1, 1], [], []>} : vector<32x128xbf16>, vector<128x128xbf16>, vector<32x128xf32> -> vector<32x128xf32>
    %51 = arith.addf %45, %50 : vector<32x128xf32>
    %c2_50 = arith.constant 2 : index
    %c0_51 = arith.constant 0 : index
    %52 = tpu.strided_load %arg7[%c2_50, %c0_51] {strides = array<i32: 2, 1>} : memref<66x128xf32, #tpu.memory_space<vmem>>, vector<32x128xf32>
    %53 = arith.truncf %52 : vector<32x128xf32> to vector<32x128xbf16>
    %c1_52 = arith.constant 1 : index
    %c2_53 = arith.constant 2 : index
    %c0_54 = arith.constant 0 : index
    %c0_55 = arith.constant 0 : index
    %54 = vector.load %arg2[%c1_52, %c2_53, %c0_54, %c0_55] : memref<6x4x128x128xbf16, #tpu.memory_space<vmem>>, vector<1x1x128x128xbf16>
    %55 = vector.shape_cast %54 : vector<1x1x128x128xbf16> to vector<128x128xbf16>
    %cst_56 = arith.constant dense<0.000000e+00> : vector<32x128xf32>
    %56 = tpu.matmul %53, %55, %cst_56 {dimension_numbers = #tpu.dot_dimension_numbers<[1], [0], [0], [1], [0, 0, 1, 1], [], []>} : vector<32x128xbf16>, vector<128x128xbf16>, vector<32x128xf32> -> vector<32x128xf32>
    %57 = arith.addf %51, %56 : vector<32x128xf32>
    %c3_57 = arith.constant 3 : index
    %c0_58 = arith.constant 0 : index
    %58 = tpu.strided_load %arg7[%c3_57, %c0_58] {strides = array<i32: 2, 1>} : memref<66x128xf32, #tpu.memory_space<vmem>>, vector<32x128xf32>
    %59 = arith.truncf %58 : vector<32x128xf32> to vector<32x128xbf16>
    %c1_59 = arith.constant 1 : index
    %c3_60 = arith.constant 3 : index
    %c0_61 = arith.constant 0 : index
    %c0_62 = arith.constant 0 : index
    %60 = vector.load %arg2[%c1_59, %c3_60, %c0_61, %c0_62] : memref<6x4x128x128xbf16, #tpu.memory_space<vmem>>, vector<1x1x128x128xbf16>
    %61 = vector.shape_cast %60 : vector<1x1x128x128xbf16> to vector<128x128xbf16>
    %cst_63 = arith.constant dense<0.000000e+00> : vector<32x128xf32>
    %62 = tpu.matmul %59, %61, %cst_63 {dimension_numbers = #tpu.dot_dimension_numbers<[1], [0], [0], [1], [0, 0, 1, 1], [], []>} : vector<32x128xbf16>, vector<128x128xbf16>, vector<32x128xf32> -> vector<32x128xf32>
    %63 = arith.addf %57, %62 : vector<32x128xf32>
    %c1_64 = arith.constant 1 : index
    %c0_65 = arith.constant 0 : index
    %64 = vector.load %arg3[%c1_64, %c0_65] : memref<8x128xf32, #tpu.memory_space<vmem>>, vector<1x128xf32>
    %65 = vector.broadcast %64 : vector<1x128xf32> to vector<32x128xf32>
    %66 = arith.mulf %63, %65 : vector<32x128xf32>
    %c1_66 = arith.constant 1 : index
    %c0_67 = arith.constant 0 : index
    %67 = vector.load %arg4[%c1_66, %c0_67] : memref<8x128xf32, #tpu.memory_space<vmem>>, vector<1x128xf32>
    %68 = vector.broadcast %67 : vector<1x128xf32> to vector<32x128xf32>
    %69 = arith.addf %66, %68 : vector<32x128xf32>
    %cst_68 = arith.constant 0.000000e+00 : f32
    %70 = vector.broadcast %cst_68 : f32 to vector<32x128xf32>
    %71 = arith.cmpf ogt, %69, %70 : vector<32x128xf32>
    %cst_69 = arith.constant 2.000000e-01 : f32
    %72 = vector.broadcast %cst_69 : f32 to vector<32x128xf32>
    %73 = arith.mulf %72, %69 : vector<32x128xf32>
    %74 = arith.select %71, %69, %73 : vector<32x128xi1>, vector<32x128xf32>
    %cst_70 = arith.constant 0.000000e+00 : f32
    %75 = vector.broadcast %cst_70 : f32 to vector<66x128xf32>
    %c0_71 = arith.constant 0 : index
    %c0_72 = arith.constant 0 : index
    %76 = vector.load %arg8[%c0_71, %c0_72] : memref<66x128xf32, #tpu.memory_space<vmem>>, vector<66x128xf32>
    tpu.vector_store %arg8[%c0_71, %c0_72], %75 {strides = array<i32>} : memref<66x128xf32, #tpu.memory_space<vmem>>, vector<66x128xf32>,
    %c1_73 = arith.constant 1 : index
    %c0_74 = arith.constant 0 : index
    %77 = vector.load %arg8[%c1_73, %c0_74] : memref<66x128xf32, #tpu.memory_space<vmem>>, vector<32x128xf32>
    tpu.vector_store %arg8[%c1_73, %c0_74], %74 {strides = array<i32>} : memref<66x128xf32, #tpu.memory_space<vmem>>, vector<32x128xf32>,
    %cst_75 = arith.constant 0.000000e+00 : f32
    %78 = vector.broadcast %cst_75 : f32 to vector<16x128xf32>
    %c0_76 = arith.constant 0 : index
    %c0_77 = arith.constant 0 : index
    %79 = tpu.strided_load %arg8[%c0_76, %c0_77] {strides = array<i32: 2, 1>} : memref<66x128xf32, #tpu.memory_space<vmem>>, vector<16x128xf32>
    %80 = arith.truncf %79 : vector<16x128xf32> to vector<16x128xbf16>
    %c2_78 = arith.constant 2 : index
    %c0_79 = arith.constant 0 : index
    %c0_80 = arith.constant 0 : index
    %c0_81 = arith.constant 0 : index
    %81 = vector.load %arg2[%c2_78, %c0_79, %c0_80, %c0_81] : memref<6x4x128x128xbf16, #tpu.memory_space<vmem>>, vector<1x1x128x128xbf16>
    %82 = vector.shape_cast %81 : vector<1x1x128x128xbf16> to vector<128x128xbf16>
    %cst_82 = arith.constant dense<0.000000e+00> : vector<16x128xf32>
    %83 = tpu.matmul %80, %82, %cst_82 {dimension_numbers = #tpu.dot_dimension_numbers<[1], [0], [0], [1], [0, 0, 1, 1], [], []>} : vector<16x128xbf16>, vector<128x128xbf16>, vector<16x128xf32> -> vector<16x128xf32>
    %84 = arith.addf %78, %83 : vector<16x128xf32>
    %c1_83 = arith.constant 1 : index
    %c0_84 = arith.constant 0 : index
    %85 = tpu.strided_load %arg8[%c1_83, %c0_84] {strides = array<i32: 2, 1>} : memref<66x128xf32, #tpu.memory_space<vmem>>, vector<16x128xf32>
    %86 = arith.truncf %85 : vector<16x128xf32> to vector<16x128xbf16>
    %c2_85 = arith.constant 2 : index
    %c1_86 = arith.constant 1 : index
    %c0_87 = arith.constant 0 : index
    %c0_88 = arith.constant 0 : index
    %87 = vector.load %arg2[%c2_85, %c1_86, %c0_87, %c0_88] : memref<6x4x128x128xbf16, #tpu.memory_space<vmem>>, vector<1x1x128x128xbf16>
    %88 = vector.shape_cast %87 : vector<1x1x128x128xbf16> to vector<128x128xbf16>
    %cst_89 = arith.constant dense<0.000000e+00> : vector<16x128xf32>
    %89 = tpu.matmul %86, %88, %cst_89 {dimension_numbers = #tpu.dot_dimension_numbers<[1], [0], [0], [1], [0, 0, 1, 1], [], []>} : vector<16x128xbf16>, vector<128x128xbf16>, vector<16x128xf32> -> vector<16x128xf32>
    %90 = arith.addf %84, %89 : vector<16x128xf32>
    %c2_90 = arith.constant 2 : index
    %c0_91 = arith.constant 0 : index
    %91 = tpu.strided_load %arg8[%c2_90, %c0_91] {strides = array<i32: 2, 1>} : memref<66x128xf32, #tpu.memory_space<vmem>>, vector<16x128xf32>
    %92 = arith.truncf %91 : vector<16x128xf32> to vector<16x128xbf16>
    %c2_92 = arith.constant 2 : index
    %c2_93 = arith.constant 2 : index
    %c0_94 = arith.constant 0 : index
    %c0_95 = arith.constant 0 : index
    %93 = vector.load %arg2[%c2_92, %c2_93, %c0_94, %c0_95] : memref<6x4x128x128xbf16, #tpu.memory_space<vmem>>, vector<1x1x128x128xbf16>
    %94 = vector.shape_cast %93 : vector<1x1x128x128xbf16> to vector<128x128xbf16>
    %cst_96 = arith.constant dense<0.000000e+00> : vector<16x128xf32>
    %95 = tpu.matmul %92, %94, %cst_96 {dimension_numbers = #tpu.dot_dimension_numbers<[1], [0], [0], [1], [0, 0, 1, 1], [], []>} : vector<16x128xbf16>, vector<128x128xbf16>, vector<16x128xf32> -> vector<16x128xf32>
    %96 = arith.addf %90, %95 : vector<16x128xf32>
    %c3_97 = arith.constant 3 : index
    %c0_98 = arith.constant 0 : index
    %97 = tpu.strided_load %arg8[%c3_97, %c0_98] {strides = array<i32: 2, 1>} : memref<66x128xf32, #tpu.memory_space<vmem>>, vector<16x128xf32>
    %98 = arith.truncf %97 : vector<16x128xf32> to vector<16x128xbf16>
    %c2_99 = arith.constant 2 : index
    %c3_100 = arith.constant 3 : index
    %c0_101 = arith.constant 0 : index
    %c0_102 = arith.constant 0 : index
    %99 = vector.load %arg2[%c2_99, %c3_100, %c0_101, %c0_102] : memref<6x4x128x128xbf16, #tpu.memory_space<vmem>>, vector<1x1x128x128xbf16>
    %100 = vector.shape_cast %99 : vector<1x1x128x128xbf16> to vector<128x128xbf16>
    %cst_103 = arith.constant dense<0.000000e+00> : vector<16x128xf32>
    %101 = tpu.matmul %98, %100, %cst_103 {dimension_numbers = #tpu.dot_dimension_numbers<[1], [0], [0], [1], [0, 0, 1, 1], [], []>} : vector<16x128xbf16>, vector<128x128xbf16>, vector<16x128xf32> -> vector<16x128xf32>
    %102 = arith.addf %96, %101 : vector<16x128xf32>
    %c2_104 = arith.constant 2 : index
    %c0_105 = arith.constant 0 : index
    %103 = vector.load %arg3[%c2_104, %c0_105] : memref<8x128xf32, #tpu.memory_space<vmem>>, vector<1x128xf32>
    %104 = vector.broadcast %103 : vector<1x128xf32> to vector<16x128xf32>
    %105 = arith.mulf %102, %104 : vector<16x128xf32>
    %c2_106 = arith.constant 2 : index
    %c0_107 = arith.constant 0 : index
    %106 = vector.load %arg4[%c2_106, %c0_107] : memref<8x128xf32, #tpu.memory_space<vmem>>, vector<1x128xf32>
    %107 = vector.broadcast %106 : vector<1x128xf32> to vector<16x128xf32>
    %108 = arith.addf %105, %107 : vector<16x128xf32>
    %cst_108 = arith.constant 0.000000e+00 : f32
    %109 = vector.broadcast %cst_108 : f32 to vector<16x128xf32>
    %110 = arith.cmpf ogt, %108, %109 : vector<16x128xf32>
    %cst_109 = arith.constant 2.000000e-01 : f32
    %111 = vector.broadcast %cst_109 : f32 to vector<16x128xf32>
    %112 = arith.mulf %111, %108 : vector<16x128xf32>
    %113 = arith.select %110, %108, %112 : vector<16x128xi1>, vector<16x128xf32>
    %cst_110 = arith.constant 0.000000e+00 : f32
    %114 = vector.broadcast %cst_110 : f32 to vector<66x128xf32>
    %c0_111 = arith.constant 0 : index
    %c0_112 = arith.constant 0 : index
    %115 = vector.load %arg7[%c0_111, %c0_112] : memref<66x128xf32, #tpu.memory_space<vmem>>, vector<66x128xf32>
    tpu.vector_store %arg7[%c0_111, %c0_112], %114 {strides = array<i32>} : memref<66x128xf32, #tpu.memory_space<vmem>>, vector<66x128xf32>,
    %c1_113 = arith.constant 1 : index
    %c0_114 = arith.constant 0 : index
    %116 = vector.load %arg7[%c1_113, %c0_114] : memref<66x128xf32, #tpu.memory_space<vmem>>, vector<16x128xf32>
    tpu.vector_store %arg7[%c1_113, %c0_114], %113 {strides = array<i32>} : memref<66x128xf32, #tpu.memory_space<vmem>>, vector<16x128xf32>,
    %cst_115 = arith.constant 0.000000e+00 : f32
    %117 = vector.broadcast %cst_115 : f32 to vector<8x128xf32>
    %c0_116 = arith.constant 0 : index
    %c0_117 = arith.constant 0 : index
    %118 = tpu.strided_load %arg7[%c0_116, %c0_117] {strides = array<i32: 2, 1>} : memref<66x128xf32, #tpu.memory_space<vmem>>, vector<8x128xf32>
    %119 = arith.truncf %118 : vector<8x128xf32> to vector<8x128xbf16>
    %c3_118 = arith.constant 3 : index
    %c0_119 = arith.constant 0 : index
    %c0_120 = arith.constant 0 : index
    %c0_121 = arith.constant 0 : index
    %120 = vector.load %arg2[%c3_118, %c0_119, %c0_120, %c0_121] : memref<6x4x128x128xbf16, #tpu.memory_space<vmem>>, vector<1x1x128x128xbf16>
    %121 = vector.shape_cast %120 : vector<1x1x128x128xbf16> to vector<128x128xbf16>
    %cst_122 = arith.constant dense<0.000000e+00> : vector<8x128xf32>
    %122 = tpu.matmul %119, %121, %cst_122 {dimension_numbers = #tpu.dot_dimension_numbers<[1], [0], [0], [1], [0, 0, 1, 1], [], []>} : vector<8x128xbf16>, vector<128x128xbf16>, vector<8x128xf32> -> vector<8x128xf32>
    %123 = arith.addf %117, %122 : vector<8x128xf32>
    %c1_123 = arith.constant 1 : index
    %c0_124 = arith.constant 0 : index
    %124 = tpu.strided_load %arg7[%c1_123, %c0_124] {strides = array<i32: 2, 1>} : memref<66x128xf32, #tpu.memory_space<vmem>>, vector<8x128xf32>
    %125 = arith.truncf %124 : vector<8x128xf32> to vector<8x128xbf16>
    %c3_125 = arith.constant 3 : index
    %c1_126 = arith.constant 1 : index
    %c0_127 = arith.constant 0 : index
    %c0_128 = arith.constant 0 : index
    %126 = vector.load %arg2[%c3_125, %c1_126, %c0_127, %c0_128] : memref<6x4x128x128xbf16, #tpu.memory_space<vmem>>, vector<1x1x128x128xbf16>
    %127 = vector.shape_cast %126 : vector<1x1x128x128xbf16> to vector<128x128xbf16>
    %cst_129 = arith.constant dense<0.000000e+00> : vector<8x128xf32>
    %128 = tpu.matmul %125, %127, %cst_129 {dimension_numbers = #tpu.dot_dimension_numbers<[1], [0], [0], [1], [0, 0, 1, 1], [], []>} : vector<8x128xbf16>, vector<128x128xbf16>, vector<8x128xf32> -> vector<8x128xf32>
    %129 = arith.addf %123, %128 : vector<8x128xf32>
    %c2_130 = arith.constant 2 : index
    %c0_131 = arith.constant 0 : index
    %130 = tpu.strided_load %arg7[%c2_130, %c0_131] {strides = array<i32: 2, 1>} : memref<66x128xf32, #tpu.memory_space<vmem>>, vector<8x128xf32>
    %131 = arith.truncf %130 : vector<8x128xf32> to vector<8x128xbf16>
    %c3_132 = arith.constant 3 : index
    %c2_133 = arith.constant 2 : index
    %c0_134 = arith.constant 0 : index
    %c0_135 = arith.constant 0 : index
    %132 = vector.load %arg2[%c3_132, %c2_133, %c0_134, %c0_135] : memref<6x4x128x128xbf16, #tpu.memory_space<vmem>>, vector<1x1x128x128xbf16>
    %133 = vector.shape_cast %132 : vector<1x1x128x128xbf16> to vector<128x128xbf16>
    %cst_136 = arith.constant dense<0.000000e+00> : vector<8x128xf32>
    %134 = tpu.matmul %131, %133, %cst_136 {dimension_numbers = #tpu.dot_dimension_numbers<[1], [0], [0], [1], [0, 0, 1, 1], [], []>} : vector<8x128xbf16>, vector<128x128xbf16>, vector<8x128xf32> -> vector<8x128xf32>
    %135 = arith.addf %129, %134 : vector<8x128xf32>
    %c3_137 = arith.constant 3 : index
    %c0_138 = arith.constant 0 : index
    %136 = tpu.strided_load %arg7[%c3_137, %c0_138] {strides = array<i32: 2, 1>} : memref<66x128xf32, #tpu.memory_space<vmem>>, vector<8x128xf32>
    %137 = arith.truncf %136 : vector<8x128xf32> to vector<8x128xbf16>
    %c3_139 = arith.constant 3 : index
    %c3_140 = arith.constant 3 : index
    %c0_141 = arith.constant 0 : index
    %c0_142 = arith.constant 0 : index
    %138 = vector.load %arg2[%c3_139, %c3_140, %c0_141, %c0_142] : memref<6x4x128x128xbf16, #tpu.memory_space<vmem>>, vector<1x1x128x128xbf16>
    %139 = vector.shape_cast %138 : vector<1x1x128x128xbf16> to vector<128x128xbf16>
    %cst_143 = arith.constant dense<0.000000e+00> : vector<8x128xf32>
    %140 = tpu.matmul %137, %139, %cst_143 {dimension_numbers = #tpu.dot_dimension_numbers<[1], [0], [0], [1], [0, 0, 1, 1], [], []>} : vector<8x128xbf16>, vector<128x128xbf16>, vector<8x128xf32> -> vector<8x128xf32>
    %141 = arith.addf %135, %140 : vector<8x128xf32>
    %c3_144 = arith.constant 3 : index
    %c0_145 = arith.constant 0 : index
    %142 = vector.load %arg3[%c3_144, %c0_145] : memref<8x128xf32, #tpu.memory_space<vmem>>, vector<1x128xf32>
    %143 = vector.broadcast %142 : vector<1x128xf32> to vector<8x128xf32>
    %144 = arith.mulf %141, %143 : vector<8x128xf32>
    %c3_146 = arith.constant 3 : index
    %c0_147 = arith.constant 0 : index
    %145 = vector.load %arg4[%c3_146, %c0_147] : memref<8x128xf32, #tpu.memory_space<vmem>>, vector<1x128xf32>
    %146 = vector.broadcast %145 : vector<1x128xf32> to vector<8x128xf32>
    %147 = arith.addf %144, %146 : vector<8x128xf32>
    %cst_148 = arith.constant 0.000000e+00 : f32
    %148 = vector.broadcast %cst_148 : f32 to vector<8x128xf32>
    %149 = arith.cmpf ogt, %147, %148 : vector<8x128xf32>
    %cst_149 = arith.constant 2.000000e-01 : f32
    %150 = vector.broadcast %cst_149 : f32 to vector<8x128xf32>
    %151 = arith.mulf %150, %147 : vector<8x128xf32>
    %152 = arith.select %149, %147, %151 : vector<8x128xi1>, vector<8x128xf32>
    %cst_150 = arith.constant 0.000000e+00 : f32
    %153 = vector.broadcast %cst_150 : f32 to vector<66x128xf32>
    %c0_151 = arith.constant 0 : index
    %c0_152 = arith.constant 0 : index
    %154 = vector.load %arg8[%c0_151, %c0_152] : memref<66x128xf32, #tpu.memory_space<vmem>>, vector<66x128xf32>
    tpu.vector_store %arg8[%c0_151, %c0_152], %153 {strides = array<i32>} : memref<66x128xf32, #tpu.memory_space<vmem>>, vector<66x128xf32>,
    %c1_153 = arith.constant 1 : index
    %c0_154 = arith.constant 0 : index
    %155 = vector.load %arg8[%c1_153, %c0_154] : memref<66x128xf32, #tpu.memory_space<vmem>>, vector<8x128xf32>
    tpu.vector_store %arg8[%c1_153, %c0_154], %152 {strides = array<i32>} : memref<66x128xf32, #tpu.memory_space<vmem>>, vector<8x128xf32>,
    %cst_155 = arith.constant 0.000000e+00 : f32
    %156 = vector.broadcast %cst_155 : f32 to vector<4x128xf32>
    %c0_156 = arith.constant 0 : index
    %c0_157 = arith.constant 0 : index
    %157 = tpu.strided_load %arg8[%c0_156, %c0_157] {strides = array<i32: 2, 1>} : memref<66x128xf32, #tpu.memory_space<vmem>>, vector<4x128xf32>
    %158 = arith.truncf %157 : vector<4x128xf32> to vector<4x128xbf16>
    %c4 = arith.constant 4 : index
    %c0_158 = arith.constant 0 : index
    %c0_159 = arith.constant 0 : index
    %c0_160 = arith.constant 0 : index
    %159 = vector.load %arg2[%c4, %c0_158, %c0_159, %c0_160] : memref<6x4x128x128xbf16, #tpu.memory_space<vmem>>, vector<1x1x128x128xbf16>
    %160 = vector.shape_cast %159 : vector<1x1x128x128xbf16> to vector<128x128xbf16>
    %cst_161 = arith.constant dense<0.000000e+00> : vector<4x128xf32>
    %161 = tpu.matmul %158, %160, %cst_161 {dimension_numbers = #tpu.dot_dimension_numbers<[1], [0], [0], [1], [0, 0, 1, 1], [], []>} : vector<4x128xbf16>, vector<128x128xbf16>, vector<4x128xf32> -> vector<4x128xf32>
    %162 = arith.addf %156, %161 : vector<4x128xf32>
    %c1_162 = arith.constant 1 : index
    %c0_163 = arith.constant 0 : index
    %163 = tpu.strided_load %arg8[%c1_162, %c0_163] {strides = array<i32: 2, 1>} : memref<66x128xf32, #tpu.memory_space<vmem>>, vector<4x128xf32>
    %164 = arith.truncf %163 : vector<4x128xf32> to vector<4x128xbf16>
    %c4_164 = arith.constant 4 : index
    %c1_165 = arith.constant 1 : index
    %c0_166 = arith.constant 0 : index
    %c0_167 = arith.constant 0 : index
    %165 = vector.load %arg2[%c4_164, %c1_165, %c0_166, %c0_167] : memref<6x4x128x128xbf16, #tpu.memory_space<vmem>>, vector<1x1x128x128xbf16>
    %166 = vector.shape_cast %165 : vector<1x1x128x128xbf16> to vector<128x128xbf16>
    %cst_168 = arith.constant dense<0.000000e+00> : vector<4x128xf32>
    %167 = tpu.matmul %164, %166, %cst_168 {dimension_numbers = #tpu.dot_dimension_numbers<[1], [0], [0], [1], [0, 0, 1, 1], [], []>} : vector<4x128xbf16>, vector<128x128xbf16>, vector<4x128xf32> -> vector<4x128xf32>
    %168 = arith.addf %162, %167 : vector<4x128xf32>
    %c2_169 = arith.constant 2 : index
    %c0_170 = arith.constant 0 : index
    %169 = tpu.strided_load %arg8[%c2_169, %c0_170] {strides = array<i32: 2, 1>} : memref<66x128xf32, #tpu.memory_space<vmem>>, vector<4x128xf32>
    %170 = arith.truncf %169 : vector<4x128xf32> to vector<4x128xbf16>
    %c4_171 = arith.constant 4 : index
    %c2_172 = arith.constant 2 : index
    %c0_173 = arith.constant 0 : index
    %c0_174 = arith.constant 0 : index
    %171 = vector.load %arg2[%c4_171, %c2_172, %c0_173, %c0_174] : memref<6x4x128x128xbf16, #tpu.memory_space<vmem>>, vector<1x1x128x128xbf16>
    %172 = vector.shape_cast %171 : vector<1x1x128x128xbf16> to vector<128x128xbf16>
    %cst_175 = arith.constant dense<0.000000e+00> : vector<4x128xf32>
    %173 = tpu.matmul %170, %172, %cst_175 {dimension_numbers = #tpu.dot_dimension_numbers<[1], [0], [0], [1], [0, 0, 1, 1], [], []>} : vector<4x128xbf16>, vector<128x128xbf16>, vector<4x128xf32> -> vector<4x128xf32>
    %174 = arith.addf %168, %173 : vector<4x128xf32>
    %c3_176 = arith.constant 3 : index
    %c0_177 = arith.constant 0 : index
    %175 = tpu.strided_load %arg8[%c3_176, %c0_177] {strides = array<i32: 2, 1>} : memref<66x128xf32, #tpu.memory_space<vmem>>, vector<4x128xf32>
    %176 = arith.truncf %175 : vector<4x128xf32> to vector<4x128xbf16>
    %c4_178 = arith.constant 4 : index
    %c3_179 = arith.constant 3 : index
    %c0_180 = arith.constant 0 : index
    %c0_181 = arith.constant 0 : index
    %177 = vector.load %arg2[%c4_178, %c3_179, %c0_180, %c0_181] : memref<6x4x128x128xbf16, #tpu.memory_space<vmem>>, vector<1x1x128x128xbf16>
    %178 = vector.shape_cast %177 : vector<1x1x128x128xbf16> to vector<128x128xbf16>
    %cst_182 = arith.constant dense<0.000000e+00> : vector<4x128xf32>
    %179 = tpu.matmul %176, %178, %cst_182 {dimension_numbers = #tpu.dot_dimension_numbers<[1], [0], [0], [1], [0, 0, 1, 1], [], []>} : vector<4x128xbf16>, vector<128x128xbf16>, vector<4x128xf32> -> vector<4x128xf32>
    %180 = arith.addf %174, %179 : vector<4x128xf32>
    %c4_183 = arith.constant 4 : index
    %c0_184 = arith.constant 0 : index
    %181 = vector.load %arg3[%c4_183, %c0_184] : memref<8x128xf32, #tpu.memory_space<vmem>>, vector<1x128xf32>
    %182 = vector.broadcast %181 : vector<1x128xf32> to vector<4x128xf32>
    %183 = arith.mulf %180, %182 : vector<4x128xf32>
    %c4_185 = arith.constant 4 : index
    %c0_186 = arith.constant 0 : index
    %184 = vector.load %arg4[%c4_185, %c0_186] : memref<8x128xf32, #tpu.memory_space<vmem>>, vector<1x128xf32>
    %185 = vector.broadcast %184 : vector<1x128xf32> to vector<4x128xf32>
    %186 = arith.addf %183, %185 : vector<4x128xf32>
    %cst_187 = arith.constant 0.000000e+00 : f32
    %187 = vector.broadcast %cst_187 : f32 to vector<4x128xf32>
    %188 = arith.cmpf ogt, %186, %187 : vector<4x128xf32>
    %cst_188 = arith.constant 2.000000e-01 : f32
    %189 = vector.broadcast %cst_188 : f32 to vector<4x128xf32>
    %190 = arith.mulf %189, %186 : vector<4x128xf32>
    %191 = arith.select %188, %186, %190 : vector<4x128xi1>, vector<4x128xf32>
    %cst_189 = arith.constant 0.000000e+00 : f32
    %192 = vector.broadcast %cst_189 : f32 to vector<66x128xf32>
    %c0_190 = arith.constant 0 : index
    %c0_191 = arith.constant 0 : index
    %193 = vector.load %arg7[%c0_190, %c0_191] : memref<66x128xf32, #tpu.memory_space<vmem>>, vector<66x128xf32>
    tpu.vector_store %arg7[%c0_190, %c0_191], %192 {strides = array<i32>} : memref<66x128xf32, #tpu.memory_space<vmem>>, vector<66x128xf32>,
    %c1_192 = arith.constant 1 : index
    %c0_193 = arith.constant 0 : index
    %194 = vector.load %arg7[%c1_192, %c0_193] : memref<66x128xf32, #tpu.memory_space<vmem>>, vector<4x128xf32>
    tpu.vector_store %arg7[%c1_192, %c0_193], %191 {strides = array<i32>} : memref<66x128xf32, #tpu.memory_space<vmem>>, vector<4x128xf32>,
    %195 = vector.shape_cast %191 : vector<4x128xf32> to vector<1x4x128xf32>
    %c0_194 = arith.constant 0 : index
    %c0_195 = arith.constant 0 : index
    %c0_196 = arith.constant 0 : index
    %196 = vector.load %arg5[%c0_194, %c0_195, %c0_196] : memref<1x4x128xf32, #tpu.memory_space<vmem>>, vector<1x4x128xf32>
    tpu.vector_store %arg5[%c0_194, %c0_195, %c0_196], %195 {strides = array<i32>} : memref<1x4x128xf32, #tpu.memory_space<vmem>>, vector<1x4x128xf32>,
    %cst_197 = arith.constant 0.000000e+00 : f32
    %197 = vector.broadcast %cst_197 : f32 to vector<1x128xf32>
    %c1_198 = arith.constant 1 : index
    %c0_199 = arith.constant 0 : index
    %198 = vector.load %arg7[%c1_198, %c0_199] : memref<66x128xf32, #tpu.memory_space<vmem>>, vector<1x128xf32>
    %199 = arith.truncf %198 : vector<1x128xf32> to vector<1x128xbf16>
    %c5 = arith.constant 5 : index
    %c0_200 = arith.constant 0 : index
    %c0_201 = arith.constant 0 : index
    %c0_202 = arith.constant 0 : index
    %200 = vector.load %arg2[%c5, %c0_200, %c0_201, %c0_202] : memref<6x4x128x128xbf16, #tpu.memory_space<vmem>>, vector<1x1x128x128xbf16>
    %201 = vector.shape_cast %200 : vector<1x1x128x128xbf16> to vector<128x128xbf16>
    %cst_203 = arith.constant dense<0.000000e+00> : vector<1x128xf32>
    %202 = tpu.matmul %199, %201, %cst_203 {dimension_numbers = #tpu.dot_dimension_numbers<[1], [0], [0], [1], [0, 0, 1, 1], [], []>} : vector<1x128xbf16>, vector<128x128xbf16>, vector<1x128xf32> -> vector<1x128xf32>
    %203 = arith.addf %197, %202 : vector<1x128xf32>
    %c2_204 = arith.constant 2 : index
    %c0_205 = arith.constant 0 : index
    %204 = vector.load %arg7[%c2_204, %c0_205] : memref<66x128xf32, #tpu.memory_space<vmem>>, vector<1x128xf32>
    %205 = arith.truncf %204 : vector<1x128xf32> to vector<1x128xbf16>
    %c5_206 = arith.constant 5 : index
    %c1_207 = arith.constant 1 : index
    %c0_208 = arith.constant 0 : index
    %c0_209 = arith.constant 0 : index
    %206 = vector.load %arg2[%c5_206, %c1_207, %c0_208, %c0_209] : memref<6x4x128x128xbf16, #tpu.memory_space<vmem>>, vector<1x1x128x128xbf16>
    %207 = vector.shape_cast %206 : vector<1x1x128x128xbf16> to vector<128x128xbf16>
    %cst_210 = arith.constant dense<0.000000e+00> : vector<1x128xf32>
    %208 = tpu.matmul %205, %207, %cst_210 {dimension_numbers = #tpu.dot_dimension_numbers<[1], [0], [0], [1], [0, 0, 1, 1], [], []>} : vector<1x128xbf16>, vector<128x128xbf16>, vector<1x128xf32> -> vector<1x128xf32>
    %209 = arith.addf %203, %208 : vector<1x128xf32>
    %c3_211 = arith.constant 3 : index
    %c0_212 = arith.constant 0 : index
    %210 = vector.load %arg7[%c3_211, %c0_212] : memref<66x128xf32, #tpu.memory_space<vmem>>, vector<1x128xf32>
    %211 = arith.truncf %210 : vector<1x128xf32> to vector<1x128xbf16>
    %c5_213 = arith.constant 5 : index
    %c2_214 = arith.constant 2 : index
    %c0_215 = arith.constant 0 : index
    %c0_216 = arith.constant 0 : index
    %212 = vector.load %arg2[%c5_213, %c2_214, %c0_215, %c0_216] : memref<6x4x128x128xbf16, #tpu.memory_space<vmem>>, vector<1x1x128x128xbf16>
    %213 = vector.shape_cast %212 : vector<1x1x128x128xbf16> to vector<128x128xbf16>
    %cst_217 = arith.constant dense<0.000000e+00> : vector<1x128xf32>
    %214 = tpu.matmul %211, %213, %cst_217 {dimension_numbers = #tpu.dot_dimension_numbers<[1], [0], [0], [1], [0, 0, 1, 1], [], []>} : vector<1x128xbf16>, vector<128x128xbf16>, vector<1x128xf32> -> vector<1x128xf32>
    %215 = arith.addf %209, %214 : vector<1x128xf32>
    %c4_218 = arith.constant 4 : index
    %c0_219 = arith.constant 0 : index
    %216 = vector.load %arg7[%c4_218, %c0_219] : memref<66x128xf32, #tpu.memory_space<vmem>>, vector<1x128xf32>
    %217 = arith.truncf %216 : vector<1x128xf32> to vector<1x128xbf16>
    %c5_220 = arith.constant 5 : index
    %c3_221 = arith.constant 3 : index
    %c0_222 = arith.constant 0 : index
    %c0_223 = arith.constant 0 : index
    %218 = vector.load %arg2[%c5_220, %c3_221, %c0_222, %c0_223] : memref<6x4x128x128xbf16, #tpu.memory_space<vmem>>, vector<1x1x128x128xbf16>
    %219 = vector.shape_cast %218 : vector<1x1x128x128xbf16> to vector<128x128xbf16>
    %cst_224 = arith.constant dense<0.000000e+00> : vector<1x128xf32>
    %220 = tpu.matmul %217, %219, %cst_224 {dimension_numbers = #tpu.dot_dimension_numbers<[1], [0], [0], [1], [0, 0, 1, 1], [], []>} : vector<1x128xbf16>, vector<128x128xbf16>, vector<1x128xf32> -> vector<1x128xf32>
    %221 = arith.addf %215, %220 : vector<1x128xf32>
    %c5_225 = arith.constant 5 : index
    %c0_226 = arith.constant 0 : index
    %222 = vector.load %arg4[%c5_225, %c0_226] : memref<8x128xf32, #tpu.memory_space<vmem>>, vector<1x128xf32>
    %223 = arith.addf %221, %222 : vector<1x128xf32>
    %cst_227 = arith.constant -3.000000e+01 : f32
    %cst_228 = arith.constant 3.000000e+01 : f32
    %224 = vector.broadcast %cst_227 : f32 to vector<1x128xf32>
    %225 = arith.maximumf %224, %223 : vector<1x128xf32>
    %226 = vector.broadcast %cst_228 : f32 to vector<1x128xf32>
    %227 = arith.minimumf %226, %225 : vector<1x128xf32>
    %cst_229 = arith.constant 0.000000e+00 : f32
    %228 = vector.broadcast %cst_229 : f32 to vector<1x128xf32>
    %229 = arith.subf %228, %227 : vector<1x128xf32>
    %230 = math.exp %229 : vector<1x128xf32>
    %cst_230 = arith.constant 1.000000e+00 : f32
    %231 = vector.broadcast %cst_230 : f32 to vector<1x128xf32>
    %232 = arith.addf %231, %230 : vector<1x128xf32>
    %233 = tpu.reciprocal %232 {approx = true} : vector<1x128xf32> -> vector<1x128xf32>
    %234 = vector.shape_cast %233 : vector<1x128xf32> to vector<1x1x128xf32>
    %c0_231 = arith.constant 0 : index
    %c0_232 = arith.constant 0 : index
    %c0_233 = arith.constant 0 : index
    %235 = vector.load %arg6[%c0_231, %c0_232, %c0_233] : memref<1x1x128xf32, #tpu.memory_space<vmem>>, vector<1x1x128xf32>
    tpu.vector_store %arg6[%c0_231, %c0_232, %c0_233], %234 {strides = array<i32>} : memref<1x1x128xf32, #tpu.memory_space<vmem>>, vector<1x1x128xf32>,
    return
  }
  func.func @transform_0(%arg0: i32) -> (i32, i32) {
    %c0_i32 = arith.constant 0 : i32
    %c0_i32_0 = arith.constant 0 : i32
    return %arg0, %c0_i32 : i32, i32
  }
  func.func @transform_1(%arg0: i32) -> (i32, i32, i32, i32) {
    %c0_i32 = arith.constant 0 : i32
    %c0_i32_0 = arith.constant 0 : i32
    %c0_i32_1 = arith.constant 0 : i32
    %c0_i32_2 = arith.constant 0 : i32
    %c0_i32_3 = arith.constant 0 : i32
    return %c0_i32, %c0_i32_0, %c0_i32_1, %c0_i32_2 : i32, i32, i32, i32
  }
  func.func @transform_2(%arg0: i32) -> (i32, i32) {
    %c0_i32 = arith.constant 0 : i32
    %c0_i32_0 = arith.constant 0 : i32
    %c0_i32_1 = arith.constant 0 : i32
    return %c0_i32, %c0_i32_0 : i32, i32
  }
  func.func @transform_3(%arg0: i32) -> (i32, i32) {
    %c0_i32 = arith.constant 0 : i32
    %c0_i32_0 = arith.constant 0 : i32
    %c0_i32_1 = arith.constant 0 : i32
    return %c0_i32, %c0_i32_0 : i32, i32
  }
  func.func @transform_4(%arg0: i32) -> (i32, i32, i32) {
    %c0_i32 = arith.constant 0 : i32
    %c0_i32_0 = arith.constant 0 : i32
    %c0_i32_1 = arith.constant 0 : i32
    return %arg0, %c0_i32, %c0_i32_0 : i32, i32, i32
  }
  func.func @transform_5(%arg0: i32) -> (i32, i32, i32) {
    %c0_i32 = arith.constant 0 : i32
    %c0_i32_0 = arith.constant 0 : i32
    %c0_i32_1 = arith.constant 0 : i32
    return %arg0, %c0_i32, %c0_i32_0 : i32, i32, i32
  }
}

</mosaic_0001>

<llo_original>
// kernel: discriminator_latent_forward.1
$region0: #{discriminator_latent_forward.1}
  #allocation0 [shape = 'u32[]', space=smem, size = 0x4, offset = 0x4, fixed_abs, tag = 'smem constant byte address 0x4 - core index']
  #allocation1 [shape = 'u32[72,128]{1,0:T(1,128)}', space=vmem, size = 0x9000, scoped, tag = 'internal scratch']
  #allocation2 [shape = 'f32[66,128]{1,0:T(8,128)}', space=vmem, size = 0x9000, scoped, tag = 'scratch operand']
  #allocation3 [shape = 'f32[66,128]{1,0:T(8,128)}', space=vmem, size = 0x9000, scoped, tag = 'scratch operand']
  %s0 = inlined_call_operand.vmem [shape: f32[272,128], index: 0, kind: input, shape index: {}]
  %s1 = inlined_call_operand.vmem [shape: bf16[6,4,128,128], index: 1, kind: input, shape index: {}]
  %s2 = inlined_call_operand.vmem [shape: f32[8,128], index: 2, kind: input, shape index: {}]
  %s3 = inlined_call_operand.vmem [shape: f32[8,128], index: 3, kind: input, shape index: {}]
  %s4 = inlined_call_operand.vmem [shape: f32[2,4,128], index: 4, kind: output, shape index: {0}]
  %s5 = inlined_call_operand.vmem [shape: f32[2,1,128], index: 5, kind: output, shape index: {1}]
  %6 = xla_tuple %s4, %s5
  %s7 = sld [smem:[#allocation0]]
  $region57: #{discriminator_latent_forward.1} parent=0
    _
  %s9 = ssub.s32 1, %s7
  %s10 = scalar_select 0, %s9, %s7
  loop: start=0, step=1, limit=4
  $region2: #{discriminator_latent_forward.1} parent=0 // loop_pre_header
    _
  $region3: #{discriminator_latent_forward.1} parent=0 // loop_header
    %s12 = sphi 0, %s16
    %p13 = scmp.ge.s32.totalorder %s12, 4
    %s22 = sphi 0, %s24
    %s25 = sphi 0, %s22
    %s26 = sphi 0, %s25
    %s42 = sphi 0, %s26
    %s46 = sphi 0, %s46
    %s48 = sphi 0, %s46
    %s49 = sphi 0, %s48
    %s63 = sphi 0, %s49
    %s67 = sphi 0, %s67
    %s69 = sphi 0, %s67
    %s70 = sphi 0, %s69
    %s84 = sphi 0, %s70
    %s88 = sphi 0, %s88
    %s90 = sphi 0, %s88
    %s91 = sphi 0, %s90
    %s105 = sphi 0, %s91
    %s111 = sphi 0, %s113
    %s114 = sphi 0, %s111
    %s115 = sphi 0, %s114
    %s131 = sphi 0, %s115
    %s137 = sphi 0, %s139
    %s140 = sphi 0, %s137
    %s141 = sphi 0, %s140
    %s157 = sphi 0, %s141
  $region4: #{discriminator_latent_forward.1} parent=0 // loop_header_branch
    %15 = sbr.rel (%p13) target = $region8
  $region5: #{discriminator_latent_forward.1} parent=0 // loop_body
    %s17 = ssub.s32 %s12, 1
    %s18 = ssub.s32 %s12, 2
    %s19 = sadd.s32 %s12, 1
    %s20 = ssub.s32 %s12, %s19
    %p21 = scmp.eq.s32.totalorder %s20, 0
    %s23 = sadd.s32 %s22, 1
    %s24 = scalar_select %p21, %s22, %s23
    %p27 = pneg %p21
    %p28 = scmp.eq.s32.totalorder %s12, 1
    %p29 = por %p27, %p28
    %p30 = scmp.ne.s32.totalorder %s22, %s25
    %p31 = scmp.eq.s32.totalorder %s12, 0
    %p32 = por %p30, %p31
    %p33 = scmp.ne.s32.totalorder %s22, %s25
    %p34 = scmp.eq.s32.totalorder %s17, 1
    %p35 = por %p33, %p34
    %p36 = scmp.ne.s32.totalorder %s25, %s26
    %p37 = scmp.eq.s32.totalorder %s17, 0
    %p38 = por %p36, %p37
    %p39 = scmp.ne.s32.totalorder %s25, %s26
    %p40 = scmp.eq.s32.totalorder %s18, 1
    %p41 = por %p39, %p40
    %p43 = scmp.ne.s32.totalorder %s26, %s42
    %p44 = scmp.eq.s32.totalorder %s18, 0
    %p45 = por %p43, %p44
    %s47 = sadd.s32 %s46, 1
    %p50 = scmp.eq.s32.totalorder %s12, 1
    %p51 = scmp.ne.s32.totalorder %s46, %s48
    %p52 = scmp.eq.s32.totalorder %s12, 0
    %p53 = por %p51, %p52
    %p54 = scmp.ne.s32.totalorder %s46, %s48
    %p55 = scmp.eq.s32.totalorder %s17, 1
    %p56 = por %p54, %p55
    %p57 = scmp.ne.s32.totalorder %s48, %s49
    %p58 = scmp.eq.s32.totalorder %s17, 0
    %p59 = por %p57, %p58
    %p60 = scmp.ne.s32.totalorder %s48, %s49
    %p61 = scmp.eq.s32.totalorder %s18, 1
    %p62 = por %p60, %p61
    %p64 = scmp.ne.s32.totalorder %s49, %s63
    %p65 = scmp.eq.s32.totalorder %s18, 0
    %p66 = por %p64, %p65
    %s68 = sadd.s32 %s67, 1
    %p71 = scmp.eq.s32.totalorder %s12, 1
    %p72 = scmp.ne.s32.totalorder %s67, %s69
    %p73 = scmp.eq.s32.totalorder %s12, 0
    %p74 = por %p72, %p73
    %p75 = scmp.ne.s32.totalorder %s67, %s69
    %p76 = scmp.eq.s32.totalorder %s17, 1
    %p77 = por %p75, %p76
    %p78 = scmp.ne.s32.totalorder %s69, %s70
    %p79 = scmp.eq.s32.totalorder %s17, 0
    %p80 = por %p78, %p79
    %p81 = scmp.ne.s32.totalorder %s69, %s70
    %p82 = scmp.eq.s32.totalorder %s18, 1
    %p83 = por %p81, %p82
    %p85 = scmp.ne.s32.totalorder %s70, %s84
    %p86 = scmp.eq.s32.totalorder %s18, 0
    %p87 = por %p85, %p86
    %s89 = sadd.s32 %s88, 1
    %p92 = scmp.eq.s32.totalorder %s12, 1
    %p93 = scmp.ne.s32.totalorder %s88, %s90
    %p94 = scmp.eq.s32.totalorder %s12, 0
    %p95 = por %p93, %p94
    %p96 = scmp.ne.s32.totalorder %s88, %s90
    %p97 = scmp.eq.s32.totalorder %s17, 1
    %p98 = por %p96, %p97
    %p99 = scmp.ne.s32.totalorder %s90, %s91
    %p100 = scmp.eq.s32.totalorder %s17, 0
    %p101 = por %p99, %p100
    %p102 = scmp.ne.s32.totalorder %s90, %s91
    %p103 = scmp.eq.s32.totalorder %s18, 1
    %p104 = por %p102, %p103
    %p106 = scmp.ne.s32.totalorder %s91, %s105
    %p107 = scmp.eq.s32.totalorder %s18, 0
    %p108 = por %p106, %p107
    %s109 = ssub.s32 %s12, %s19
    %p110 = scmp.eq.s32.totalorder %s109, 0
    %s112 = sadd.s32 %s111, 1
    %s113 = scalar_select %p110, %s111, %s112
    %p116 = pneg %p110
    %p117 = scmp.eq.s32.totalorder %s12, 1
    %p118 = por %p116, %p117
    %p119 = scmp.ne.s32.totalorder %s111, %s114
    %p120 = scmp.eq.s32.totalorder %s12, 0
    %p121 = por %p119, %p120
    %p122 = scmp.ne.s32.totalorder %s111, %s114
    %p123 = scmp.eq.s32.totalorder %s17, 1
    %p124 = por %p122, %p123
    %p125 = scmp.ne.s32.totalorder %s114, %s115
    %p126 = scmp.eq.s32.totalorder %s17, 0
    %p127 = por %p125, %p126
    %p128 = scmp.ne.s32.totalorder %s114, %s115
    %p129 = scmp.eq.s32.totalorder %s18, 1
    %p130 = por %p128, %p129
    %p132 = scmp.ne.s32.totalorder %s115, %s131
    %p133 = scmp.eq.s32.totalorder %s18, 0
    %p134 = por %p132, %p133
    %s135 = ssub.s32 %s12, %s19
    %p136 = scmp.eq.s32.totalorder %s135, 0
    %s138 = sadd.s32 %s137, 1
    %s139 = scalar_select %p136, %s137, %s138
    %p142 = pneg %p136
    %p143 = scmp.eq.s32.totalorder %s12, 1
    %p144 = por %p142, %p143
    %p145 = scmp.ne.s32.totalorder %s137, %s140
    %p146 = scmp.eq.s32.totalorder %s12, 0
    %p147 = por %p145, %p146
    %p148 = scmp.ne.s32.totalorder %s137, %s140
    %p149 = scmp.eq.s32.totalorder %s17, 1
    %p150 = por %p148, %p149
    %p151 = scmp.ne.s32.totalorder %s140, %s141
    %p152 = scmp.eq.s32.totalorder %s17, 0
    %p153 = por %p151, %p152
    %p154 = scmp.ne.s32.totalorder %s140, %s141
    %p155 = scmp.eq.s32.totalorder %s18, 1
    %p156 = por %p154, %p155
    %p158 = scmp.ne.s32.totalorder %s141, %s157
    %p159 = scmp.eq.s32.totalorder %s18, 0
    %p160 = por %p158, %p159
    %p161 = scmp.le.s32.totalorder 1, %s12
    %p162 = scmp.lt.s32.totalorder %s12, 3
    %p163 = pnand %p161, %p162
    %p164 = pneg %p163
    // Predicated region
    $region9: #{discriminator_latent_forward.1} parent=5 // pred_check
      _
    $region10: #{discriminator_latent_forward.1} parent=5 // pred_check_branch
      %166 = sbr.rel (%p163) target = $region12
    $region11: #{discriminator_latent_forward.1} parent=5 // pred_region
      %s167 = ssub.s32 %s12, 1
      // Predicated region
      $region13: #{discriminator_latent_forward.1} parent=11 // pred_check
        %p168 = pneg %p59
      $region14: #{discriminator_latent_forward.1} parent=11 // pred_check_branch
        %170 = sbr.rel (%p168) target = $region16
      $region15: #{discriminator_latent_forward.1} parent=11 // pred_region
        _
      $region16: #{discriminator_latent_forward.1} parent=11 // pred_fallthru
        _
      // Predicated region
      $region17: #{discriminator_latent_forward.1} parent=11 // pred_check
        %p171 = pneg %p80
      $region18: #{discriminator_latent_forward.1} parent=11 // pred_check_branch
        %173 = sbr.rel (%p171) target = $region20
      $region19: #{discriminator_latent_forward.1} parent=11 // pred_region
        _
      $region20: #{discriminator_latent_forward.1} parent=11 // pred_fallthru
        _
      // Predicated region
      $region21: #{discriminator_latent_forward.1} parent=11 // pred_check
        %p174 = pneg %p101
      $region22: #{discriminator_latent_forward.1} parent=11 // pred_check_branch
        %176 = sbr.rel (%p174) target = $region24
      $region23: #{discriminator_latent_forward.1} parent=11 // pred_region
        _
      $region24: #{discriminator_latent_forward.1} parent=11 // pred_fallthru
        _
    $region12: #{discriminator_latent_forward.1} parent=5 // pred_fallthru
      _
    %p177 = scmp.lt.s32.totalorder %s12, 2
    // Predicated region
    $region25: #{discriminator_latent_forward.1} parent=5 // pred_check
      %p178 = pneg %p177
    $region26: #{discriminator_latent_forward.1} parent=5 // pred_check_branch
      %180 = sbr.rel (%p178) target = $region28
    $region27: #{discriminator_latent_forward.1} parent=5 // pred_region
      // Predicated region
      $region29: #{discriminator_latent_forward.1} parent=27 // pred_check
        %p181 = pneg %p32
      $region30: #{discriminator_latent_forward.1} parent=27 // pred_check_branch
        %183 = sbr.rel (%p181) target = $region32
      $region31: #{discriminator_latent_forward.1} parent=27 // pred_region
        %s184 = smul.u32 17, %s12
        %p185 = scmp.lt.s32.totalorder %s184, 33
        %s186 = scalar_select %p185, %s184, 33
        %s187 = smul.addr %s186, 8
        %s188 = scalar_lea.vmem %s0, %s187
        %s189 = smul.u32 17, %s12
      $region32: #{discriminator_latent_forward.1} parent=27 // pred_fallthru
        _
    $region28: #{discriminator_latent_forward.1} parent=5 // pred_fallthru
      _
    %p190 = scmp.le.s32.totalorder 1, %s12
    %p191 = scmp.lt.s32.totalorder %s12, 3
    %p192 = pnand %p190, %p191
    %p193 = pneg %p192
    // Predicated region
    $region33: #{discriminator_latent_forward.1} parent=5 // pred_check
      _
    $region34: #{discriminator_latent_forward.1} parent=5 // pred_check_branch
      %195 = sbr.rel (%p192) target = $region36
    $region35: #{discriminator_latent_forward.1} parent=5 // pred_region
      %s196 = ssub.s32 %s12, 1
      %s197 = smul.u32 17, %s17
      %p198 = scmp.lt.s32.totalorder %s197, 33
      %s199 = scalar_select %p198, %s197, 33
      %s200 = smul.addr %s199, 8
      %s201 = scalar_lea.vmem %s0, %s200
      %p202 = pneg %p38
      %p203 = pneg %p35
      %p204 = pneg %p59
      %p205 = pneg %p56
      %p206 = pneg %p80
      %p207 = pneg %p77
      %p208 = pneg %p101
      %p209 = pneg %p98
      %p210 = pneg %p127
      %p211 = pneg %p124
      %p212 = scmp.lt.s32.totalorder %s17, 1
      %s213 = scalar_select %p212, %s17, 1
      %s214 = smul.addr %s213, 4
      %s215 = scalar_lea.vmem %s4, %s214
      %p216 = pneg %p153
      %p217 = pneg %p150
      %p218 = scmp.lt.s32.totalorder %s17, 1
      %s219 = scalar_select %p218, %s17, 1
      %s220 = scalar_lea.vmem %s5, %s219
      %s221 = smul.u32 17, %s17
      %p222 = scmp.lt.s32.totalorder %s221, 33
      %s223 = scalar_select %p222, %s221, 33
      %s224 = smul.addr %s223, 8
      %s225 = scalar_lea.vmem %s0, %s224
      %s226 = smul.u32 17, %s17
      %p227 = scmp.lt.s32.totalorder %s17, 1
      %s228 = scalar_select %p227, %s17, 1
      %s229 = smul.addr %s228, 4
      %s230 = scalar_lea.vmem %s4, %s229
      %p231 = scmp.lt.s32.totalorder %s17, 1
      %s232 = scalar_select %p231, %s17, 1
      %s233 = scalar_lea.vmem %s5, %s232
      %v234 = vld [vmem:[%s225] ss:$2 sm:$0xff]
      %s235 = scalar_lea.vmem %s225, 16
      %v236 = vld [vmem:[%s235] ss:$2 sm:$0xff]
      %s237 = scalar_lea.vmem %s225, 32
      %v238 = vld [vmem:[%s237] ss:$2 sm:$0xff]
      %s239 = scalar_lea.vmem %s225, 48
      %v240 = vld [vmem:[%s239] ss:$2 sm:$0xff]
      %s241 = scalar_lea.vmem %s225, 64
      %v242 = vld [vmem:[%s241] ss:$2 sm:$0xff]
      %s243 = scalar_lea.vmem %s225, 80
      %v244 = vld [vmem:[%s243] ss:$2 sm:$0xff]
      %s245 = scalar_lea.vmem %s225, 96
      %v246 = vld [vmem:[%s245] ss:$2 sm:$0xff]
      %s247 = scalar_lea.vmem %s225, 112
      %v248 = vld [vmem:[%s247] ss:$2 sm:$0xff]
      %v249 = vpack.c.bf16 %v236, %v234
      %v250 = vpack.c.bf16 %v240, %v238
      %v251 = vpack.c.bf16 %v244, %v242
      %v252 = vpack.c.bf16 %v248, %v246
      %v253 = vld [vmem:[%s1] sm:$0xf]
      %v254 = vld [vmem:[%s1 + $0x4] sm:$0xf]
      %v255 = vld [vmem:[%s1 + $0x8] sm:$0xf]
      %v256 = vld [vmem:[%s1 + $0xc] sm:$0xf]
      %v257 = vld [vmem:[%s1 + $0x10] sm:$0xf]
      %v258 = vld [vmem:[%s1 + $0x14] sm:$0xf]
      %v259 = vld [vmem:[%s1 + $0x18] sm:$0xf]
      %v260 = vld [vmem:[%s1 + $0x1c] sm:$0xf]
      %v261 = vld [vmem:[%s1 + $0x20] sm:$0xf]
      %v262 = vld [vmem:[%s1 + $0x24] sm:$0xf]
      %v263 = vld [vmem:[%s1 + $0x28] sm:$0xf]
      %v264 = vld [vmem:[%s1 + $0x2c] sm:$0xf]
      %v265 = vld [vmem:[%s1 + $0x30] sm:$0xf]
      %v266 = vld [vmem:[%s1 + $0x34] sm:$0xf]
      %v267 = vld [vmem:[%s1 + $0x38] sm:$0xf]
      %v268 = vld [vmem:[%s1 + $0x3c] sm:$0xf]
      %s269 = scalar_lea.vmem %s225, 1
      %v270 = vld [vmem:[%s269] ss:$2 sm:$0xff]
      %s271 = scalar_lea.vmem %s225, 17
      %v272 = vld [vmem:[%s271] ss:$2 sm:$0xff]
      %s273 = scalar_lea.vmem %s225, 33
      %v274 = vld [vmem:[%s273] ss:$2 sm:$0xff]
      %s275 = scalar_lea.vmem %s225, 49
      %v276 = vld [vmem:[%s275] ss:$2 sm:$0xff]
      %s277 = scalar_lea.vmem %s225, 65
      %v278 = vld [vmem:[%s277] ss:$2 sm:$0xff]
      %s279 = scalar_lea.vmem %s225, 81
      %v280 = vld [vmem:[%s279] ss:$2 sm:$0xff]
      %s281 = scalar_lea.vmem %s225, 97
      %v282 = vld [vmem:[%s281] ss:$2 sm:$0xff]
      %s283 = scalar_lea.vmem %s225, 113
      %v284 = vld [vmem:[%s283] ss:$2 sm:$0xff]
      %v285 = vpack.c.bf16 %v272, %v270
      %v286 = vpack.c.bf16 %v276, %v274
      %v287 = vpack.c.bf16 %v280, %v278
      %v288 = vpack.c.bf16 %v284, %v282
      %s289 = scalar_lea.vmem %s1, 64
      %v290 = vld [vmem:[%s289] sm:$0xf]
      %v291 = vld [vmem:[%s289 + $0x4] sm:$0xf]
      %v292 = vld [vmem:[%s289 + $0x8] sm:$0xf]
      %v293 = vld [vmem:[%s289 + $0xc] sm:$0xf]
      %v294 = vld [vmem:[%s289 + $0x10] sm:$0xf]
      %v295 = vld [vmem:[%s289 + $0x14] sm:$0xf]
      %v296 = vld [vmem:[%s289 + $0x18] sm:$0xf]
      %v297 = vld [vmem:[%s289 + $0x1c] sm:$0xf]
      %v298 = vld [vmem:[%s289 + $0x20] sm:$0xf]
      %v299 = vld [vmem:[%s289 + $0x24] sm:$0xf]
      %v300 = vld [vmem:[%s289 + $0x28] sm:$0xf]
      %v301 = vld [vmem:[%s289 + $0x2c] sm:$0xf]
      %v302 = vld [vmem:[%s289 + $0x30] sm:$0xf]
      %v303 = vld [vmem:[%s289 + $0x34] sm:$0xf]
      %v304 = vld [vmem:[%s289 + $0x38] sm:$0xf]
      %v305 = vld [vmem:[%s289 + $0x3c] sm:$0xf]
      %v322 = vunpack.c.l.b16 %v290
      %v323 = vunpack.c.l.b16 %v291
      %v324 = vunpack.c.l.b16 %v292
      %v325 = vunpack.c.l.b16 %v293
      %v326 = vunpack.c.l.b16 %v294
      %v327 = vunpack.c.l.b16 %v295
      %v328 = vunpack.c.l.b16 %v296
      %v329 = vunpack.c.l.b16 %v297
      %v330 = vunpack.c.l.b16 %v298
      %v331 = vunpack.c.l.b16 %v299
      %v332 = vunpack.c.l.b16 %v300
      %v333 = vunpack.c.l.b16 %v301
      %v334 = vunpack.c.l.b16 %v302
      %v335 = vunpack.c.l.b16 %v303
      %v336 = vunpack.c.l.b16 %v304
      %v337 = vunpack.c.l.b16 %v305
      %v338 = vpack.c.b16 %v323, %v322
      %v339 = vpack.c.b16 %v325, %v324
      %v340 = vpack.c.b16 %v327, %v326
      %v341 = vpack.c.b16 %v329, %v328
      %v342 = vpack.c.b16 %v331, %v330
      %v343 = vpack.c.b16 %v333, %v332
      %v344 = vpack.c.b16 %v335, %v334
      %v345 = vpack.c.b16 %v337, %v336
      %354 = vmatpush.bf16.msra.mxu0 %v345
      %355 = vmatpush.bf16.msra.mxu0 %v344
      %356 = vmatpush.bf16.msra.mxu0 %v343
      %357 = vmatpush.bf16.msra.mxu0 %v342
      %358 = vmatpush.bf16.msra.mxu0 %v341
      %359 = vmatpush.bf16.msra.mxu0 %v340
      %360 = vmatpush.bf16.msra.mxu0 %v339
      %361 = vmatpush.bf16.msra.mxu0 %v338
      %362 = vmatmul.bf16.gmra.mxu0 %v285
      %v363 = vpop.f32.mrf.mxu0
      %v364 = vadd.f32 0.0, %v363
      %v365 = vpop.f32.mrf.mxu0
      %v366 = vadd.f32 0.0, %v365
      %367 = vmatmul.bf16.gmra.mxu0 %v286
      %v368 = vpop.f32.mrf.mxu0
      %v369 = vadd.f32 0.0, %v368
      %v370 = vpop.f32.mrf.mxu0
      %v371 = vadd.f32 0.0, %v370
      %372 = vmatmul.bf16.gmra.mxu0 %v287
      %v373 = vpop.f32.mrf.mxu0
      %v374 = vadd.f32 0.0, %v373
      %v375 = vpop.f32.mrf.mxu0
      %v376 = vadd.f32 0.0, %v375
      %377 = vmatmul.bf16.gmra.mxu0 %v288
      %v378 = vpop.f32.mrf.mxu0
      %v379 = vadd.f32 0.0, %v378
      %v380 = vpop.f32.mrf.mxu0
      %v381 = vadd.f32 0.0, %v380
      %382 = vdwg.mxu0
      %v399 = vunpack.c.l.b16 %v253
      %v400 = vunpack.c.l.b16 %v254
      %v401 = vunpack.c.l.b16 %v255
      %v402 = vunpack.c.l.b16 %v256
      %v403 = vunpack.c.l.b16 %v257
      %v404 = vunpack.c.l.b16 %v258
      %v405 = vunpack.c.l.b16 %v259
      %v406 = vunpack.c.l.b16 %v260
      %v407 = vunpack.c.l.b16 %v261
      %v408 = vunpack.c.l.b16 %v262
      %v409 = vunpack.c.l.b16 %v263
      %v410 = vunpack.c.l.b16 %v264
      %v411 = vunpack.c.l.b16 %v265
      %v412 = vunpack.c.l.b16 %v266
      %v413 = vunpack.c.l.b16 %v267
      %v414 = vunpack.c.l.b16 %v268
      %v415 = vpack.c.b16 %v400, %v399
      %v416 = vpack.c.b16 %v402, %v401
      %v417 = vpack.c.b16 %v404, %v403
      %v418 = vpack.c.b16 %v406, %v405
      %v419 = vpack.c.b16 %v408, %v407
      %v420 = vpack.c.b16 %v410, %v409
      %v421 = vpack.c.b16 %v412, %v411
      %v422 = vpack.c.b16 %v414, %v413
      %431 = vmatpush.bf16.msra.mxu0 %v422
      %432 = vmatpush.bf16.msra.mxu0 %v421
      %433 = vmatpush.bf16.msra.mxu0 %v420
      %434 = vmatpush.bf16.msra.mxu0 %v419
      %435 = vmatpush.bf16.msra.mxu0 %v418
      %436 = vmatpush.bf16.msra.mxu0 %v417
      %437 = vmatpush.bf16.msra.mxu0 %v416
      %438 = vmatpush.bf16.msra.mxu0 %v415
      %439 = vmatmul.bf16.gmra.mxu0 %v249
      %v440 = vpop.f32.mrf.mxu0
      %v441 = vadd.f32 %v364, %v440
      %v442 = vpop.f32.mrf.mxu0
      %v443 = vadd.f32 %v366, %v442
      %444 = vmatmul.bf16.gmra.mxu0 %v250
      %v445 = vpop.f32.mrf.mxu0
      %v446 = vadd.f32 %v369, %v445
      %v447 = vpop.f32.mrf.mxu0
      %v448 = vadd.f32 %v371, %v447
      %449 = vmatmul.bf16.gmra.mxu0 %v251
      %v450 = vpop.f32.mrf.mxu0
      %v451 = vadd.f32 %v374, %v450
      %v452 = vpop.f32.mrf.mxu0
      %v453 = vadd.f32 %v376, %v452
      %454 = vmatmul.bf16.gmra.mxu0 %v252
      %v455 = vpop.f32.mrf.mxu0
      %v456 = vadd.f32 %v379, %v455
      %v457 = vpop.f32.mrf.mxu0
      %v458 = vadd.f32 %v381, %v457
      %459 = vdwg.mxu0
      %s460 = scalar_lea.vmem %s225, 2
      %v461 = vld [vmem:[%s460] ss:$2 sm:$0xff]
      %s462 = scalar_lea.vmem %s225, 18
      %v463 = vld [vmem:[%s462] ss:$2 sm:$0xff]
      %s464 = scalar_lea.vmem %s225, 34
      %v465 = vld [vmem:[%s464] ss:$2 sm:$0xff]
      %s466 = scalar_lea.vmem %s225, 50
      %v467 = vld [vmem:[%s466] ss:$2 sm:$0xff]
      %s468 = scalar_lea.vmem %s225, 66
      %v469 = vld [vmem:[%s468] ss:$2 sm:$0xff]
      %s470 = scalar_lea.vmem %s225, 82
      %v471 = vld [vmem:[%s470] ss:$2 sm:$0xff]
      %s472 = scalar_lea.vmem %s225, 98
      %v473 = vld [vmem:[%s472] ss:$2 sm:$0xff]
      %s474 = scalar_lea.vmem %s225, 114
      %v475 = vld [vmem:[%s474] ss:$2 sm:$0xff]
      %v476 = vpack.c.bf16 %v463, %v461
      %v477 = vpack.c.bf16 %v467, %v465
      %v478 = vpack.c.bf16 %v471, %v469
      %v479 = vpack.c.bf16 %v475, %v473
      %s480 = scalar_lea.vmem %s1, 128
      %v481 = vld [vmem:[%s480] sm:$0xf]
      %v482 = vld [vmem:[%s480 + $0x4] sm:$0xf]
      %v483 = vld [vmem:[%s480 + $0x8] sm:$0xf]
      %v484 = vld [vmem:[%s480 + $0xc] sm:$0xf]
      %v485 = vld [vmem:[%s480 + $0x10] sm:$0xf]
      %v486 = vld [vmem:[%s480 + $0x14] sm:$0xf]
      %v487 = vld [vmem:[%s480 + $0x18] sm:$0xf]
      %v488 = vld [vmem:[%s480 + $0x1c] sm:$0xf]
      %v489 = vld [vmem:[%s480 + $0x20] sm:$0xf]
      %v490 = vld [vmem:[%s480 + $0x24] sm:$0xf]
      %v491 = vld [vmem:[%s480 + $0x28] sm:$0xf]
      %v492 = vld [vmem:[%s480 + $0x2c] sm:$0xf]
      %v493 = vld [vmem:[%s480 + $0x30] sm:$0xf]
      %v494 = vld [vmem:[%s480 + $0x34] sm:$0xf]
      %v495 = vld [vmem:[%s480 + $0x38] sm:$0xf]
      %v496 = vld [vmem:[%s480 + $0x3c] sm:$0xf]
      %v513 = vunpack.c.l.b16 %v481
      %v514 = vunpack.c.l.b16 %v482
      %v515 = vunpack.c.l.b16 %v483
      %v516 = vunpack.c.l.b16 %v484
      %v517 = vunpack.c.l.b16 %v485
      %v518 = vunpack.c.l.b16 %v486
      %v519 = vunpack.c.l.b16 %v487
      %v520 = vunpack.c.l.b16 %v488
      %v521 = vunpack.c.l.b16 %v489
      %v522 = vunpack.c.l.b16 %v490
      %v523 = vunpack.c.l.b16 %v491
      %v524 = vunpack.c.l.b16 %v492
      %v525 = vunpack.c.l.b16 %v493
      %v526 = vunpack.c.l.b16 %v494
      %v527 = vunpack.c.l.b16 %v495
      %v528 = vunpack.c.l.b16 %v496
      %v529 = vpack.c.b16 %v514, %v513
      %v530 = vpack.c.b16 %v516, %v515
      %v531 = vpack.c.b16 %v518, %v517
      %v532 = vpack.c.b16 %v520, %v519
      %v533 = vpack.c.b16 %v522, %v521
      %v534 = vpack.c.b16 %v524, %v523
      %v535 = vpack.c.b16 %v526, %v525
      %v536 = vpack.c.b16 %v528, %v527
      %545 = vmatpush.bf16.msra.mxu0 %v536
      %546 = vmatpush.bf16.msra.mxu0 %v535
      %547 = vmatpush.bf16.msra.mxu0 %v534
      %548 = vmatpush.bf16.msra.mxu0 %v533
      %549 = vmatpush.bf16.msra.mxu0 %v532
      %550 = vmatpush.bf16.msra.mxu0 %v531
      %551 = vmatpush.bf16.msra.mxu0 %v530
      %552 = vmatpush.bf16.msra.mxu0 %v529
      %553 = vmatmul.bf16.gmra.mxu0 %v476
      %v554 = vpop.f32.mrf.mxu0
      %v555 = vadd.f32 0.0, %v554
      %v556 = vpop.f32.mrf.mxu0
      %v557 = vadd.f32 0.0, %v556
      %558 = vmatmul.bf16.gmra.mxu0 %v477
      %v559 = vpop.f32.mrf.mxu0
      %v560 = vadd.f32 0.0, %v559
      %v561 = vpop.f32.mrf.mxu0
      %v562 = vadd.f32 0.0, %v561
      %563 = vmatmul.bf16.gmra.mxu0 %v478
      %v564 = vpop.f32.mrf.mxu0
      %v565 = vadd.f32 0.0, %v564
      %v566 = vpop.f32.mrf.mxu0
      %v567 = vadd.f32 0.0, %v566
      %568 = vmatmul.bf16.gmra.mxu0 %v479
      %v569 = vpop.f32.mrf.mxu0
      %v570 = vadd.f32 0.0, %v569
      %v571 = vpop.f32.mrf.mxu0
      %v572 = vadd.f32 0.0, %v571
      %573 = vdwg.mxu0
      %v574 = vadd.f32 %v441, %v555
      %v575 = vadd.f32 %v443, %v557
      %v576 = vadd.f32 %v446, %v560
      %v577 = vadd.f32 %v448, %v562
      %v578 = vadd.f32 %v451, %v565
      %v579 = vadd.f32 %v453, %v567
      %v580 = vadd.f32 %v456, %v570
      %v581 = vadd.f32 %v458, %v572
      %s582 = scalar_lea.vmem %s225, 3
      %v583 = vld [vmem:[%s582] ss:$2 sm:$0xff]
      %s584 = scalar_lea.vmem %s225, 19
      %v585 = vld [vmem:[%s584] ss:$2 sm:$0xff]
      %s586 = scalar_lea.vmem %s225, 35
      %v587 = vld [vmem:[%s586] ss:$2 sm:$0xff]
      %s588 = scalar_lea.vmem %s225, 51
      %v589 = vld [vmem:[%s588] ss:$2 sm:$0xff]
      %s590 = scalar_lea.vmem %s225, 67
      %v591 = vld [vmem:[%s590] ss:$2 sm:$0xff]
      %s592 = scalar_lea.vmem %s225, 83
      %v593 = vld [vmem:[%s592] ss:$2 sm:$0xff]
      %s594 = scalar_lea.vmem %s225, 99
      %v595 = vld [vmem:[%s594] ss:$2 sm:$0xff]
      %s596 = scalar_lea.vmem %s225, 115
      %v597 = vld [vmem:[%s596] ss:$2 sm:$0xff]
      %v598 = vpack.c.bf16 %v585, %v583
      %v599 = vpack.c.bf16 %v589, %v587
      %v600 = vpack.c.bf16 %v593, %v591
      %v601 = vpack.c.bf16 %v597, %v595
      %s602 = scalar_lea.vmem %s1, 192
      %v603 = vld [vmem:[%s602] sm:$0xf]
      %v604 = vld [vmem:[%s602 + $0x4] sm:$0xf]
      %v605 = vld [vmem:[%s602 + $0x8] sm:$0xf]
      %v606 = vld [vmem:[%s602 + $0xc] sm:$0xf]
      %v607 = vld [vmem:[%s602 + $0x10] sm:$0xf]
      %v608 = vld [vmem:[%s602 + $0x14] sm:$0xf]
      %v609 = vld [vmem:[%s602 + $0x18] sm:$0xf]
      %v610 = vld [vmem:[%s602 + $0x1c] sm:$0xf]
      %v611 = vld [vmem:[%s602 + $0x20] sm:$0xf]
      %v612 = vld [vmem:[%s602 + $0x24] sm:$0xf]
      %v613 = vld [vmem:[%s602 + $0x28] sm:$0xf]
      %v614 = vld [vmem:[%s602 + $0x2c] sm:$0xf]
      %v615 = vld [vmem:[%s602 + $0x30] sm:$0xf]
      %v616 = vld [vmem:[%s602 + $0x34] sm:$0xf]
      %v617 = vld [vmem:[%s602 + $0x38] sm:$0xf]
      %v618 = vld [vmem:[%s602 + $0x3c] sm:$0xf]
      %v635 = vunpack.c.l.b16 %v603
      %v636 = vunpack.c.l.b16 %v604
      %v637 = vunpack.c.l.b16 %v605
      %v638 = vunpack.c.l.b16 %v606
      %v639 = vunpack.c.l.b16 %v607
      %v640 = vunpack.c.l.b16 %v608
      %v641 = vunpack.c.l.b16 %v609
      %v642 = vunpack.c.l.b16 %v610
      %v643 = vunpack.c.l.b16 %v611
      %v644 = vunpack.c.l.b16 %v612
      %v645 = vunpack.c.l.b16 %v613
      %v646 = vunpack.c.l.b16 %v614
      %v647 = vunpack.c.l.b16 %v615
      %v648 = vunpack.c.l.b16 %v616
      %v649 = vunpack.c.l.b16 %v617
      %v650 = vunpack.c.l.b16 %v618
      %v651 = vpack.c.b16 %v636, %v635
      %v652 = vpack.c.b16 %v638, %v637
      %v653 = vpack.c.b16 %v640, %v639
      %v654 = vpack.c.b16 %v642, %v641
      %v655 = vpack.c.b16 %v644, %v643
      %v656 = vpack.c.b16 %v646, %v645
      %v657 = vpack.c.b16 %v648, %v647
      %v658 = vpack.c.b16 %v650, %v649
      %667 = vmatpush.bf16.msra.mxu0 %v658
      %668 = vmatpush.bf16.msra.mxu0 %v657
      %669 = vmatpush.bf16.msra.mxu0 %v656
      %670 = vmatpush.bf16.msra.mxu0 %v655
      %671 = vmatpush.bf16.msra.mxu0 %v654
      %672 = vmatpush.bf16.msra.mxu0 %v653
      %673 = vmatpush.bf16.msra.mxu0 %v652
      %674 = vmatpush.bf16.msra.mxu0 %v651
      %675 = vmatmul.bf16.gmra.mxu0 %v598
      %v676 = vpop.f32.mrf.mxu0
      %v677 = vadd.f32 0.0, %v676
      %v678 = vpop.f32.mrf.mxu0
      %v679 = vadd.f32 0.0, %v678
      %680 = vmatmul.bf16.gmra.mxu0 %v599
      %v681 = vpop.f32.mrf.mxu0
      %v682 = vadd.f32 0.0, %v681
      %v683 = vpop.f32.mrf.mxu0
      %v684 = vadd.f32 0.0, %v683
      %685 = vmatmul.bf16.gmra.mxu0 %v600
      %v686 = vpop.f32.mrf.mxu0
      %v687 = vadd.f32 0.0, %v686
      %v688 = vpop.f32.mrf.mxu0
      %v689 = vadd.f32 0.0, %v688
      %690 = vmatmul.bf16.gmra.mxu0 %v601
      %v691 = vpop.f32.mrf.mxu0
      %v692 = vadd.f32 0.0, %v691
      %v693 = vpop.f32.mrf.mxu0
      %v694 = vadd.f32 0.0, %v693
      %695 = vdwg.mxu0
      %v696 = vadd.f32 %v574, %v677
      %v697 = vadd.f32 %v575, %v679
      %v698 = vadd.f32 %v576, %v682
      %v699 = vadd.f32 %v577, %v684
      %v700 = vadd.f32 %v578, %v687
      %v701 = vadd.f32 %v579, %v689
      %v702 = vadd.f32 %v580, %v692
      %v703 = vadd.f32 %v581, %v694
      %v704 = vld [vmem:[%s2] sm:$0x1]
      %v705 = vperm.slane %v704, 0
      %v706 = vmul.f32 %v696, %v705
      %v707 = vmul.f32 %v697, %v705
      %v708 = vmul.f32 %v698, %v705
      %v709 = vmul.f32 %v699, %v705
      %v710 = vmul.f32 %v700, %v705
      %v711 = vmul.f32 %v701, %v705
      %v712 = vmul.f32 %v702, %v705
      %v713 = vmul.f32 %v703, %v705
      %v714 = vld [vmem:[%s3] sm:$0x1]
      %v715 = vperm.slane %v714, 0
      %v716 = vadd.f32 %v706, %v715
      %v717 = vadd.f32 %v707, %v715
      %v718 = vadd.f32 %v708, %v715
      %v719 = vadd.f32 %v709, %v715
      %v720 = vadd.f32 %v710, %v715
      %v721 = vadd.f32 %v711, %v715
      %v722 = vadd.f32 %v712, %v715
      %v723 = vadd.f32 %v713, %v715
      %vm724 = vcmp.gt.f32.partialorder %v716, 0.0
      %vm725 = vcmp.gt.f32.partialorder %v717, 0.0
      %vm726 = vcmp.gt.f32.partialorder %v718, 0.0
      %vm727 = vcmp.gt.f32.partialorder %v719, 0.0
      %vm728 = vcmp.gt.f32.partialorder %v720, 0.0
      %vm729 = vcmp.gt.f32.partialorder %v721, 0.0
      %vm730 = vcmp.gt.f32.partialorder %v722, 0.0
      %vm731 = vcmp.gt.f32.partialorder %v723, 0.0
      %v732 = vmul.f32 %v716, 0.2
      %v733 = vmul.f32 %v717, 0.2
      %v734 = vmul.f32 %v718, 0.2
      %v735 = vmul.f32 %v719, 0.2
      %v736 = vmul.f32 %v720, 0.2
      %v737 = vmul.f32 %v721, 0.2
      %v738 = vmul.f32 %v722, 0.2
      %v739 = vmul.f32 %v723, 0.2
      %v740 = vsel %vm724, %v716, %v732
      %v741 = vsel %vm725, %v717, %v733
      %v742 = vsel %vm726, %v718, %v734
      %v743 = vsel %vm727, %v719, %v735
      %v744 = vsel %vm728, %v720, %v736
      %v745 = vsel %vm729, %v721, %v737
      %v746 = vsel %vm730, %v722, %v738
      %v747 = vsel %vm731, %v723, %v739
      %748 = vst [vmem:[#allocation2] sm:$0xff] 0.0
      %749 = vst [vmem:[#allocation2 + $0x8] sm:$0xff] 0.0
      %750 = vst [vmem:[#allocation2 + $0x10] sm:$0xff] 0.0
      %751 = vst [vmem:[#allocation2 + $0x18] sm:$0xff] 0.0
      %752 = vst [vmem:[#allocation2 + $0x20] sm:$0xff] 0.0
      %753 = vst [vmem:[#allocation2 + $0x28] sm:$0xff] 0.0
      %754 = vst [vmem:[#allocation2 + $0x30] sm:$0xff] 0.0
      %755 = vst [vmem:[#allocation2 + $0x38] sm:$0xff] 0.0
      %756 = vst [vmem:[#allocation2 + $0x40] sm:$0x3] 0.0
      %757 = vst [vmem:[#allocation2 + $0x1] sm:$0xff] %v740
      %758 = vst [vmem:[#allocation2 + $0x9] sm:$0xff] %v741
      %759 = vst [vmem:[#allocation2 + $0x11] sm:$0xff] %v742
      %760 = vst [vmem:[#allocation2 + $0x19] sm:$0xff] %v743
      %761 = vst [vmem:[#allocation2 + $0x21] sm:$0xff] %v744
      %762 = vst [vmem:[#allocation2 + $0x29] sm:$0xff] %v745
      %763 = vst [vmem:[#allocation2 + $0x31] sm:$0xff] %v746
      %764 = vst [vmem:[#allocation2 + $0x39] sm:$0xff] %v747
      %v765 = vld [vmem:[#allocation2] ss:$2 sm:$0xff]
      %s766 = scalar_lea.vmem [#allocation2], 16
      %v767 = vld [vmem:[%s766] ss:$2 sm:$0xff]
      %s768 = scalar_lea.vmem [#allocation2], 32
      %v769 = vld [vmem:[%s768] ss:$2 sm:$0xff]
      %s770 = scalar_lea.vmem [#allocation2], 48
      %v771 = vld [vmem:[%s770] ss:$2 sm:$0xff]
      %v772 = vpack.c.bf16 %v767, %v765
      %v773 = vpack.c.bf16 %v771, %v769
      %s774 = scalar_lea.vmem %s1, 256
      %v775 = vld [vmem:[%s774] sm:$0xf]
      %v776 = vld [vmem:[%s774 + $0x4] sm:$0xf]
      %v777 = vld [vmem:[%s774 + $0x8] sm:$0xf]
      %v778 = vld [vmem:[%s774 + $0xc] sm:$0xf]
      %v779 = vld [vmem:[%s774 + $0x10] sm:$0xf]
      %v780 = vld [vmem:[%s774 + $0x14] sm:$0xf]
      %v781 = vld [vmem:[%s774 + $0x18] sm:$0xf]
      %v782 = vld [vmem:[%s774 + $0x1c] sm:$0xf]
      %v783 = vld [vmem:[%s774 + $0x20] sm:$0xf]
      %v784 = vld [vmem:[%s774 + $0x24] sm:$0xf]
      %v785 = vld [vmem:[%s774 + $0x28] sm:$0xf]
      %v786 = vld [vmem:[%s774 + $0x2c] sm:$0xf]
      %v787 = vld [vmem:[%s774 + $0x30] sm:$0xf]
      %v788 = vld [vmem:[%s774 + $0x34] sm:$0xf]
      %v789 = vld [vmem:[%s774 + $0x38] sm:$0xf]
      %v790 = vld [vmem:[%s774 + $0x3c] sm:$0xf]
      %s791 = scalar_lea.vmem [#allocation2], 1
      %v792 = vld [vmem:[%s791] ss:$2 sm:$0xff]
      %s793 = scalar_lea.vmem [#allocation2], 17
      %v794 = vld [vmem:[%s793] ss:$2 sm:$0xff]
      %s795 = scalar_lea.vmem [#allocation2], 33
      %v796 = vld [vmem:[%s795] ss:$2 sm:$0xff]
      %s797 = scalar_lea.vmem [#allocation2], 49
      %v798 = vld [vmem:[%s797] ss:$2 sm:$0xff]
      %v799 = vpack.c.bf16 %v794, %v792
      %v800 = vpack.c.bf16 %v798, %v796
      %s801 = scalar_lea.vmem %s1, 320
      %v802 = vld [vmem:[%s801] sm:$0xf]
      %v803 = vld [vmem:[%s801 + $0x4] sm:$0xf]
      %v804 = vld [vmem:[%s801 + $0x8] sm:$0xf]
      %v805 = vld [vmem:[%s801 + $0xc] sm:$0xf]
      %v806 = vld [vmem:[%s801 + $0x10] sm:$0xf]
      %v807 = vld [vmem:[%s801 + $0x14] sm:$0xf]
      %v808 = vld [vmem:[%s801 + $0x18] sm:$0xf]
      %v809 = vld [vmem:[%s801 + $0x1c] sm:$0xf]
      %v810 = vld [vmem:[%s801 + $0x20] sm:$0xf]
      %v811 = vld [vmem:[%s801 + $0x24] sm:$0xf]
      %v812 = vld [vmem:[%s801 + $0x28] sm:$0xf]
      %v813 = vld [vmem:[%s801 + $0x2c] sm:$0xf]
      %v814 = vld [vmem:[%s801 + $0x30] sm:$0xf]
      %v815 = vld [vmem:[%s801 + $0x34] sm:$0xf]
      %v816 = vld [vmem:[%s801 + $0x38] sm:$0xf]
      %v817 = vld [vmem:[%s801 + $0x3c] sm:$0xf]
      %v834 = vunpack.c.l.b16 %v802
      %v835 = vunpack.c.l.b16 %v803
      %v836 = vunpack.c.l.b16 %v804
      %v837 = vunpack.c.l.b16 %v805
      %v838 = vunpack.c.l.b16 %v806
      %v839 = vunpack.c.l.b16 %v807
      %v840 = vunpack.c.l.b16 %v808
      %v841 = vunpack.c.l.b16 %v809
      %v842 = vunpack.c.l.b16 %v810
      %v843 = vunpack.c.l.b16 %v811
      %v844 = vunpack.c.l.b16 %v812
      %v845 = vunpack.c.l.b16 %v813
      %v846 = vunpack.c.l.b16 %v814
      %v847 = vunpack.c.l.b16 %v815
      %v848 = vunpack.c.l.b16 %v816
      %v849 = vunpack.c.l.b16 %v817
      %v850 = vpack.c.b16 %v835, %v834
      %v851 = vpack.c.b16 %v837, %v836
      %v852 = vpack.c.b16 %v839, %v838
      %v853 = vpack.c.b16 %v841, %v840
      %v854 = vpack.c.b16 %v843, %v842
      %v855 = vpack.c.b16 %v845, %v844
      %v856 = vpack.c.b16 %v847, %v846
      %v857 = vpack.c.b16 %v849, %v848
      %866 = vmatpush.bf16.msra.mxu0 %v857
      %867 = vmatpush.bf16.msra.mxu0 %v856
      %868 = vmatpush.bf16.msra.mxu0 %v855
      %869 = vmatpush.bf16.msra.mxu0 %v854
      %870 = vmatpush.bf16.msra.mxu0 %v853
      %871 = vmatpush.bf16.msra.mxu0 %v852
      %872 = vmatpush.bf16.msra.mxu0 %v851
      %873 = vmatpush.bf16.msra.mxu0 %v850
      %874 = vmatmul.bf16.gmra.mxu0 %v799
      %v875 = vpop.f32.mrf.mxu0
      %v876 = vadd.f32 0.0, %v875
      %v877 = vpop.f32.mrf.mxu0
      %v878 = vadd.f32 0.0, %v877
      %879 = vmatmul.bf16.gmra.mxu0 %v800
      %v880 = vpop.f32.mrf.mxu0
      %v881 = vadd.f32 0.0, %v880
      %v882 = vpop.f32.mrf.mxu0
      %v883 = vadd.f32 0.0, %v882
      %884 = vdwg.mxu0
      %v901 = vunpack.c.l.b16 %v775
      %v902 = vunpack.c.l.b16 %v776
      %v903 = vunpack.c.l.b16 %v777
      %v904 = vunpack.c.l.b16 %v778
      %v905 = vunpack.c.l.b16 %v779
      %v906 = vunpack.c.l.b16 %v780
      %v907 = vunpack.c.l.b16 %v781
      %v908 = vunpack.c.l.b16 %v782
      %v909 = vunpack.c.l.b16 %v783
      %v910 = vunpack.c.l.b16 %v784
      %v911 = vunpack.c.l.b16 %v785
      %v912 = vunpack.c.l.b16 %v786
      %v913 = vunpack.c.l.b16 %v787
      %v914 = vunpack.c.l.b16 %v788
      %v915 = vunpack.c.l.b16 %v789
      %v916 = vunpack.c.l.b16 %v790
      %v917 = vpack.c.b16 %v902, %v901
      %v918 = vpack.c.b16 %v904, %v903
      %v919 = vpack.c.b16 %v906, %v905
      %v920 = vpack.c.b16 %v908, %v907
      %v921 = vpack.c.b16 %v910, %v909
      %v922 = vpack.c.b16 %v912, %v911
      %v923 = vpack.c.b16 %v914, %v913
      %v924 = vpack.c.b16 %v916, %v915
      %933 = vmatpush.bf16.msra.mxu0 %v924
      %934 = vmatpush.bf16.msra.mxu0 %v923
      %935 = vmatpush.bf16.msra.mxu0 %v922
      %936 = vmatpush.bf16.msra.mxu0 %v921
      %937 = vmatpush.bf16.msra.mxu0 %v920
      %938 = vmatpush.bf16.msra.mxu0 %v919
      %939 = vmatpush.bf16.msra.mxu0 %v918
      %940 = vmatpush.bf16.msra.mxu0 %v917
      %941 = vmatmul.bf16.gmra.mxu0 %v772
      %v942 = vpop.f32.mrf.mxu0
      %v943 = vadd.f32 %v876, %v942
      %v944 = vpop.f32.mrf.mxu0
      %v945 = vadd.f32 %v878, %v944
      %946 = vmatmul.bf16.gmra.mxu0 %v773
      %v947 = vpop.f32.mrf.mxu0
      %v948 = vadd.f32 %v881, %v947
      %v949 = vpop.f32.mrf.mxu0
      %v950 = vadd.f32 %v883, %v949
      %951 = vdwg.mxu0
      %s952 = scalar_lea.vmem [#allocation2], 2
      %v953 = vld [vmem:[%s952] ss:$2 sm:$0xff]
      %s954 = scalar_lea.vmem [#allocation2], 18
      %v955 = vld [vmem:[%s954] ss:$2 sm:$0xff]
      %s956 = scalar_lea.vmem [#allocation2], 34
      %v957 = vld [vmem:[%s956] ss:$2 sm:$0xff]
      %s958 = scalar_lea.vmem [#allocation2], 50
      %v959 = vld [vmem:[%s958] ss:$2 sm:$0xff]
      %v960 = vpack.c.bf16 %v955, %v953
      %v961 = vpack.c.bf16 %v959, %v957
      %s962 = scalar_lea.vmem %s1, 384
      %v963 = vld [vmem:[%s962] sm:$0xf]
      %v964 = vld [vmem:[%s962 + $0x4] sm:$0xf]
      %v965 = vld [vmem:[%s962 + $0x8] sm:$0xf]
      %v966 = vld [vmem:[%s962 + $0xc] sm:$0xf]
      %v967 = vld [vmem:[%s962 + $0x10] sm:$0xf]
      %v968 = vld [vmem:[%s962 + $0x14] sm:$0xf]
      %v969 = vld [vmem:[%s962 + $0x18] sm:$0xf]
      %v970 = vld [vmem:[%s962 + $0x1c] sm:$0xf]
      %v971 = vld [vmem:[%s962 + $0x20] sm:$0xf]
      %v972 = vld [vmem:[%s962 + $0x24] sm:$0xf]
      %v973 = vld [vmem:[%s962 + $0x28] sm:$0xf]
      %v974 = vld [vmem:[%s962 + $0x2c] sm:$0xf]
      %v975 = vld [vmem:[%s962 + $0x30] sm:$0xf]
      %v976 = vld [vmem:[%s962 + $0x34] sm:$0xf]
      %v977 = vld [vmem:[%s962 + $0x38] sm:$0xf]
      %v978 = vld [vmem:[%s962 + $0x3c] sm:$0xf]
      %v995 = vunpack.c.l.b16 %v963
      %v996 = vunpack.c.l.b16 %v964
      %v997 = vunpack.c.l.b16 %v965
      %v998 = vunpack.c.l.b16 %v966
      %v999 = vunpack.c.l.b16 %v967
      %v1000 = vunpack.c.l.b16 %v968
      %v1001 = vunpack.c.l.b16 %v969
      %v1002 = vunpack.c.l.b16 %v970
      %v1003 = vunpack.c.l.b16 %v971
      %v1004 = vunpack.c.l.b16 %v972
      %v1005 = vunpack.c.l.b16 %v973
      %v1006 = vunpack.c.l.b16 %v974
      %v1007 = vunpack.c.l.b16 %v975
      %v1008 = vunpack.c.l.b16 %v976
      %v1009 = vunpack.c.l.b16 %v977
      %v1010 = vunpack.c.l.b16 %v978
      %v1011 = vpack.c.b16 %v996, %v995
      %v1012 = vpack.c.b16 %v998, %v997
      %v1013 = vpack.c.b16 %v1000, %v999
      %v1014 = vpack.c.b16 %v1002, %v1001
      %v1015 = vpack.c.b16 %v1004, %v1003
      %v1016 = vpack.c.b16 %v1006, %v1005
      %v1017 = vpack.c.b16 %v1008, %v1007
      %v1018 = vpack.c.b16 %v1010, %v1009
      %1027 = vmatpush.bf16.msra.mxu0 %v1018
      %1028 = vmatpush.bf16.msra.mxu0 %v1017
      %1029 = vmatpush.bf16.msra.mxu0 %v1016
      %1030 = vmatpush.bf16.msra.mxu0 %v1015
      %1031 = vmatpush.bf16.msra.mxu0 %v1014
      %1032 = vmatpush.bf16.msra.mxu0 %v1013
      %1033 = vmatpush.bf16.msra.mxu0 %v1012
      %1034 = vmatpush.bf16.msra.mxu0 %v1011
      %1035 = vmatmul.bf16.gmra.mxu0 %v960
      %v1036 = vpop.f32.mrf.mxu0
      %v1037 = vadd.f32 0.0, %v1036
      %v1038 = vpop.f32.mrf.mxu0
      %v1039 = vadd.f32 0.0, %v1038
      %1040 = vmatmul.bf16.gmra.mxu0 %v961
      %v1041 = vpop.f32.mrf.mxu0
      %v1042 = vadd.f32 0.0, %v1041
      %v1043 = vpop.f32.mrf.mxu0
      %v1044 = vadd.f32 0.0, %v1043
      %1045 = vdwg.mxu0
      %v1046 = vadd.f32 %v943, %v1037
      %v1047 = vadd.f32 %v945, %v1039
      %v1048 = vadd.f32 %v948, %v1042
      %v1049 = vadd.f32 %v950, %v1044
      %s1050 = scalar_lea.vmem [#allocation2], 3
      %v1051 = vld [vmem:[%s1050] ss:$2 sm:$0xff]
      %s1052 = scalar_lea.vmem [#allocation2], 19
      %v1053 = vld [vmem:[%s1052] ss:$2 sm:$0xff]
      %s1054 = scalar_lea.vmem [#allocation2], 35
      %v1055 = vld [vmem:[%s1054] ss:$2 sm:$0xff]
      %s1056 = scalar_lea.vmem [#allocation2], 51
      %v1057 = vld [vmem:[%s1056] ss:$2 sm:$0xff]
      %v1058 = vpack.c.bf16 %v1053, %v1051
      %v1059 = vpack.c.bf16 %v1057, %v1055
      %s1060 = scalar_lea.vmem %s1, 448
      %v1061 = vld [vmem:[%s1060] sm:$0xf]
      %v1062 = vld [vmem:[%s1060 + $0x4] sm:$0xf]
      %v1063 = vld [vmem:[%s1060 + $0x8] sm:$0xf]
      %v1064 = vld [vmem:[%s1060 + $0xc] sm:$0xf]
      %v1065 = vld [vmem:[%s1060 + $0x10] sm:$0xf]
      %v1066 = vld [vmem:[%s1060 + $0x14] sm:$0xf]
      %v1067 = vld [vmem:[%s1060 + $0x18] sm:$0xf]
      %v1068 = vld [vmem:[%s1060 + $0x1c] sm:$0xf]
      %v1069 = vld [vmem:[%s1060 + $0x20] sm:$0xf]
      %v1070 = vld [vmem:[%s1060 + $0x24] sm:$0xf]
      %v1071 = vld [vmem:[%s1060 + $0x28] sm:$0xf]
      %v1072 = vld [vmem:[%s1060 + $0x2c] sm:$0xf]
      %v1073 = vld [vmem:[%s1060 + $0x30] sm:$0xf]
      %v1074 = vld [vmem:[%s1060 + $0x34] sm:$0xf]
      %v1075 = vld [vmem:[%s1060 + $0x38] sm:$0xf]
      %v1076 = vld [vmem:[%s1060 + $0x3c] sm:$0xf]
      %v1093 = vunpack.c.l.b16 %v1061
      %v1094 = vunpack.c.l.b16 %v1062
      %v1095 = vunpack.c.l.b16 %v1063
      %v1096 = vunpack.c.l.b16 %v1064
      %v1097 = vunpack.c.l.b16 %v1065
      %v1098 = vunpack.c.l.b16 %v1066
      %v1099 = vunpack.c.l.b16 %v1067
      %v1100 = vunpack.c.l.b16 %v1068
      %v1101 = vunpack.c.l.b16 %v1069
      %v1102 = vunpack.c.l.b16 %v1070
      %v1103 = vunpack.c.l.b16 %v1071
      %v1104 = vunpack.c.l.b16 %v1072
      %v1105 = vunpack.c.l.b16 %v1073
      %v1106 = vunpack.c.l.b16 %v1074
      %v1107 = vunpack.c.l.b16 %v1075
      %v1108 = vunpack.c.l.b16 %v1076
      %v1109 = vpack.c.b16 %v1094, %v1093
      %v1110 = vpack.c.b16 %v1096, %v1095
      %v1111 = vpack.c.b16 %v1098, %v1097
      %v1112 = vpack.c.b16 %v1100, %v1099
      %v1113 = vpack.c.b16 %v1102, %v1101
      %v1114 = vpack.c.b16 %v1104, %v1103
      %v1115 = vpack.c.b16 %v1106, %v1105
      %v1116 = vpack.c.b16 %v1108, %v1107
      %1125 = vmatpush.bf16.msra.mxu0 %v1116
      %1126 = vmatpush.bf16.msra.mxu0 %v1115
      %1127 = vmatpush.bf16.msra.mxu0 %v1114
      %1128 = vmatpush.bf16.msra.mxu0 %v1113
      %1129 = vmatpush.bf16.msra.mxu0 %v1112
      %1130 = vmatpush.bf16.msra.mxu0 %v1111
      %1131 = vmatpush.bf16.msra.mxu0 %v1110
      %1132 = vmatpush.bf16.msra.mxu0 %v1109
      %1133 = vmatmul.bf16.gmra.mxu0 %v1058
      %v1134 = vpop.f32.mrf.mxu0
      %v1135 = vadd.f32 0.0, %v1134
      %v1136 = vpop.f32.mrf.mxu0
      %v1137 = vadd.f32 0.0, %v1136
      %1138 = vmatmul.bf16.gmra.mxu0 %v1059
      %v1139 = vpop.f32.mrf.mxu0
      %v1140 = vadd.f32 0.0, %v1139
      %v1141 = vpop.f32.mrf.mxu0
      %v1142 = vadd.f32 0.0, %v1141
      %1143 = vdwg.mxu0
      %v1144 = vadd.f32 %v1046, %v1135
      %v1145 = vadd.f32 %v1047, %v1137
      %v1146 = vadd.f32 %v1048, %v1140
      %v1147 = vadd.f32 %v1049, %v1142
      %v1148 = vld [vmem:[%s2 + $0x1] sm:$0x1]
      %v1149 = vperm.slane %v1148, 0
      %v1150 = vmul.f32 %v1144, %v1149
      %v1151 = vmul.f32 %v1145, %v1149
      %v1152 = vmul.f32 %v1146, %v1149
      %v1153 = vmul.f32 %v1147, %v1149
      %v1154 = vld [vmem:[%s3 + $0x1] sm:$0x1]
      %v1155 = vperm.slane %v1154, 0
      %v1156 = vadd.f32 %v1150, %v1155
      %v1157 = vadd.f32 %v1151, %v1155
      %v1158 = vadd.f32 %v1152, %v1155
      %v1159 = vadd.f32 %v1153, %v1155
      %vm1160 = vcmp.gt.f32.partialorder %v1156, 0.0
      %vm1161 = vcmp.gt.f32.partialorder %v1157, 0.0
      %vm1162 = vcmp.gt.f32.partialorder %v1158, 0.0
      %vm1163 = vcmp.gt.f32.partialorder %v1159, 0.0
      %v1164 = vmul.f32 %v1156, 0.2
      %v1165 = vmul.f32 %v1157, 0.2
      %v1166 = vmul.f32 %v1158, 0.2
      %v1167 = vmul.f32 %v1159, 0.2
      %v1168 = vsel %vm1160, %v1156, %v1164
      %v1169 = vsel %vm1161, %v1157, %v1165
      %v1170 = vsel %vm1162, %v1158, %v1166
      %v1171 = vsel %vm1163, %v1159, %v1167
      %1172 = vst [vmem:[#allocation3] sm:$0xff] 0.0
      %1173 = vst [vmem:[#allocation3 + $0x8] sm:$0xff] 0.0
      %1174 = vst [vmem:[#allocation3 + $0x10] sm:$0xff] 0.0
      %1175 = vst [vmem:[#allocation3 + $0x18] sm:$0xff] 0.0
      %1176 = vst [vmem:[#allocation3 + $0x20] sm:$0xff] 0.0
      %1177 = vst [vmem:[#allocation3 + $0x28] sm:$0xff] 0.0
      %1178 = vst [vmem:[#allocation3 + $0x30] sm:$0xff] 0.0
      %1179 = vst [vmem:[#allocation3 + $0x38] sm:$0xff] 0.0
      %1180 = vst [vmem:[#allocation3 + $0x40] sm:$0x3] 0.0
      %1181 = vst [vmem:[#allocation3 + $0x1] sm:$0xff] %v1168
      %1182 = vst [vmem:[#allocation3 + $0x9] sm:$0xff] %v1169
      %1183 = vst [vmem:[#allocation3 + $0x11] sm:$0xff] %v1170
      %1184 = vst [vmem:[#allocation3 + $0x19] sm:$0xff] %v1171
      %v1185 = vld [vmem:[#allocation3] ss:$2 sm:$0xff]
      %s1186 = scalar_lea.vmem [#allocation3], 16
      %v1187 = vld [vmem:[%s1186] ss:$2 sm:$0xff]
      %v1188 = vpack.c.bf16 %v1187, %v1185
      %s1189 = scalar_lea.vmem %s1, 512
      %v1190 = vld [vmem:[%s1189] sm:$0xf]
      %v1191 = vld [vmem:[%s1189 + $0x4] sm:$0xf]
      %v1192 = vld [vmem:[%s1189 + $0x8] sm:$0xf]
      %v1193 = vld [vmem:[%s1189 + $0xc] sm:$0xf]
      %v1194 = vld [vmem:[%s1189 + $0x10] sm:$0xf]
      %v1195 = vld [vmem:[%s1189 + $0x14] sm:$0xf]
      %v1196 = vld [vmem:[%s1189 + $0x18] sm:$0xf]
      %v1197 = vld [vmem:[%s1189 + $0x1c] sm:$0xf]
      %v1198 = vld [vmem:[%s1189 + $0x20] sm:$0xf]
      %v1199 = vld [vmem:[%s1189 + $0x24] sm:$0xf]
      %v1200 = vld [vmem:[%s1189 + $0x28] sm:$0xf]
      %v1201 = vld [vmem:[%s1189 + $0x2c] sm:$0xf]
      %v1202 = vld [vmem:[%s1189 + $0x30] sm:$0xf]
      %v1203 = vld [vmem:[%s1189 + $0x34] sm:$0xf]
      %v1204 = vld [vmem:[%s1189 + $0x38] sm:$0xf]
      %v1205 = vld [vmem:[%s1189 + $0x3c] sm:$0xf]
      %s1206 = scalar_lea.vmem [#allocation3], 1
      %v1207 = vld [vmem:[%s1206] ss:$2 sm:$0xff]
      %s1208 = scalar_lea.vmem [#allocation3], 17
      %v1209 = vld [vmem:[%s1208] ss:$2 sm:$0xff]
      %v1210 = vpack.c.bf16 %v1209, %v1207
      %s1211 = scalar_lea.vmem %s1, 576
      %v1212 = vld [vmem:[%s1211] sm:$0xf]
      %v1213 = vld [vmem:[%s1211 + $0x4] sm:$0xf]
      %v1214 = vld [vmem:[%s1211 + $0x8] sm:$0xf]
      %v1215 = vld [vmem:[%s1211 + $0xc] sm:$0xf]
      %v1216 = vld [vmem:[%s1211 + $0x10] sm:$0xf]
      %v1217 = vld [vmem:[%s1211 + $0x14] sm:$0xf]
      %v1218 = vld [vmem:[%s1211 + $0x18] sm:$0xf]
      %v1219 = vld [vmem:[%s1211 + $0x1c] sm:$0xf]
      %v1220 = vld [vmem:[%s1211 + $0x20] sm:$0xf]
      %v1221 = vld [vmem:[%s1211 + $0x24] sm:$0xf]
      %v1222 = vld [vmem:[%s1211 + $0x28] sm:$0xf]
      %v1223 = vld [vmem:[%s1211 + $0x2c] sm:$0xf]
      %v1224 = vld [vmem:[%s1211 + $0x30] sm:$0xf]
      %v1225 = vld [vmem:[%s1211 + $0x34] sm:$0xf]
      %v1226 = vld [vmem:[%s1211 + $0x38] sm:$0xf]
      %v1227 = vld [vmem:[%s1211 + $0x3c] sm:$0xf]
      %v1244 = vunpack.c.l.b16 %v1212
      %v1245 = vunpack.c.l.b16 %v1213
      %v1246 = vunpack.c.l.b16 %v1214
      %v1247 = vunpack.c.l.b16 %v1215
      %v1248 = vunpack.c.l.b16 %v1216
      %v1249 = vunpack.c.l.b16 %v1217
      %v1250 = vunpack.c.l.b16 %v1218
      %v1251 = vunpack.c.l.b16 %v1219
      %v1252 = vunpack.c.l.b16 %v1220
      %v1253 = vunpack.c.l.b16 %v1221
      %v1254 = vunpack.c.l.b16 %v1222
      %v1255 = vunpack.c.l.b16 %v1223
      %v1256 = vunpack.c.l.b16 %v1224
      %v1257 = vunpack.c.l.b16 %v1225
      %v1258 = vunpack.c.l.b16 %v1226
      %v1259 = vunpack.c.l.b16 %v1227
      %v1260 = vpack.c.b16 %v1245, %v1244
      %v1261 = vpack.c.b16 %v1247, %v1246
      %v1262 = vpack.c.b16 %v1249, %v1248
      %v1263 = vpack.c.b16 %v1251, %v1250
      %v1264 = vpack.c.b16 %v1253, %v1252
      %v1265 = vpack.c.b16 %v1255, %v1254
      %v1266 = vpack.c.b16 %v1257, %v1256
      %v1267 = vpack.c.b16 %v1259, %v1258
      %1276 = vmatpush.bf16.msra.mxu0 %v1267
      %1277 = vmatpush.bf16.msra.mxu0 %v1266
      %1278 = vmatpush.bf16.msra.mxu0 %v1265
      %1279 = vmatpush.bf16.msra.mxu0 %v1264
      %1280 = vmatpush.bf16.msra.mxu0 %v1263
      %1281 = vmatpush.bf16.msra.mxu0 %v1262
      %1282 = vmatpush.bf16.msra.mxu0 %v1261
      %1283 = vmatpush.bf16.msra.mxu0 %v1260
      %1284 = vmatmul.bf16.gmra.mxu0 %v1210
      %v1285 = vpop.f32.mrf.mxu0
      %v1286 = vadd.f32 0.0, %v1285
      %v1287 = vpop.f32.mrf.mxu0
      %v1288 = vadd.f32 0.0, %v1287
      %1289 = vdwg.mxu0
      %v1306 = vunpack.c.l.b16 %v1190
      %v1307 = vunpack.c.l.b16 %v1191
      %v1308 = vunpack.c.l.b16 %v1192
      %v1309 = vunpack.c.l.b16 %v1193
      %v1310 = vunpack.c.l.b16 %v1194
      %v1311 = vunpack.c.l.b16 %v1195
      %v1312 = vunpack.c.l.b16 %v1196
      %v1313 = vunpack.c.l.b16 %v1197
      %v1314 = vunpack.c.l.b16 %v1198
      %v1315 = vunpack.c.l.b16 %v1199
      %v1316 = vunpack.c.l.b16 %v1200
      %v1317 = vunpack.c.l.b16 %v1201
      %v1318 = vunpack.c.l.b16 %v1202
      %v1319 = vunpack.c.l.b16 %v1203
      %v1320 = vunpack.c.l.b16 %v1204
      %v1321 = vunpack.c.l.b16 %v1205
      %v1322 = vpack.c.b16 %v1307, %v1306
      %v1323 = vpack.c.b16 %v1309, %v1308
      %v1324 = vpack.c.b16 %v1311, %v1310
      %v1325 = vpack.c.b16 %v1313, %v1312
      %v1326 = vpack.c.b16 %v1315, %v1314
      %v1327 = vpack.c.b16 %v1317, %v1316
      %v1328 = vpack.c.b16 %v1319, %v1318
      %v1329 = vpack.c.b16 %v1321, %v1320
      %1338 = vmatpush.bf16.msra.mxu0 %v1329
      %1339 = vmatpush.bf16.msra.mxu0 %v1328
      %1340 = vmatpush.bf16.msra.mxu0 %v1327
      %1341 = vmatpush.bf16.msra.mxu0 %v1326
      %1342 = vmatpush.bf16.msra.mxu0 %v1325
      %1343 = vmatpush.bf16.msra.mxu0 %v1324
      %1344 = vmatpush.bf16.msra.mxu0 %v1323
      %1345 = vmatpush.bf16.msra.mxu0 %v1322
      %1346 = vmatmul.bf16.gmra.mxu0 %v1188
      %v1347 = vpop.f32.mrf.mxu0
      %v1348 = vadd.f32 %v1286, %v1347
      %v1349 = vpop.f32.mrf.mxu0
      %v1350 = vadd.f32 %v1288, %v1349
      %1351 = vdwg.mxu0
      %s1352 = scalar_lea.vmem [#allocation3], 2
      %v1353 = vld [vmem:[%s1352] ss:$2 sm:$0xff]
      %s1354 = scalar_lea.vmem [#allocation3], 18
      %v1355 = vld [vmem:[%s1354] ss:$2 sm:$0xff]
      %v1356 = vpack.c.bf16 %v1355, %v1353
      %s1357 = scalar_lea.vmem %s1, 640
      %v1358 = vld [vmem:[%s1357] sm:$0xf]
      %v1359 = vld [vmem:[%s1357 + $0x4] sm:$0xf]
      %v1360 = vld [vmem:[%s1357 + $0x8] sm:$0xf]
      %v1361 = vld [vmem:[%s1357 + $0xc] sm:$0xf]
      %v1362 = vld [vmem:[%s1357 + $0x10] sm:$0xf]
      %v1363 = vld [vmem:[%s1357 + $0x14] sm:$0xf]
      %v1364 = vld [vmem:[%s1357 + $0x18] sm:$0xf]
      %v1365 = vld [vmem:[%s1357 + $0x1c] sm:$0xf]
      %v1366 = vld [vmem:[%s1357 + $0x20] sm:$0xf]
      %v1367 = vld [vmem:[%s1357 + $0x24] sm:$0xf]
      %v1368 = vld [vmem:[%s1357 + $0x28] sm:$0xf]
      %v1369 = vld [vmem:[%s1357 + $0x2c] sm:$0xf]
      %v1370 = vld [vmem:[%s1357 + $0x30] sm:$0xf]
      %v1371 = vld [vmem:[%s1357 + $0x34] sm:$0xf]
      %v1372 = vld [vmem:[%s1357 + $0x38] sm:$0xf]
      %v1373 = vld [vmem:[%s1357 + $0x3c] sm:$0xf]
      %v1390 = vunpack.c.l.b16 %v1358
      %v1391 = vunpack.c.l.b16 %v1359
      %v1392 = vunpack.c.l.b16 %v1360
      %v1393 = vunpack.c.l.b16 %v1361
      %v1394 = vunpack.c.l.b16 %v1362
      %v1395 = vunpack.c.l.b16 %v1363
      %v1396 = vunpack.c.l.b16 %v1364
      %v1397 = vunpack.c.l.b16 %v1365
      %v1398 = vunpack.c.l.b16 %v1366
      %v1399 = vunpack.c.l.b16 %v1367
      %v1400 = vunpack.c.l.b16 %v1368
      %v1401 = vunpack.c.l.b16 %v1369
      %v1402 = vunpack.c.l.b16 %v1370
      %v1403 = vunpack.c.l.b16 %v1371
      %v1404 = vunpack.c.l.b16 %v1372
      %v1405 = vunpack.c.l.b16 %v1373
      %v1406 = vpack.c.b16 %v1391, %v1390
      %v1407 = vpack.c.b16 %v1393, %v1392
      %v1408 = vpack.c.b16 %v1395, %v1394
      %v1409 = vpack.c.b16 %v1397, %v1396
      %v1410 = vpack.c.b16 %v1399, %v1398
      %v1411 = vpack.c.b16 %v1401, %v1400
      %v1412 = vpack.c.b16 %v1403, %v1402
      %v1413 = vpack.c.b16 %v1405, %v1404
      %1422 = vmatpush.bf16.msra.mxu0 %v1413
      %1423 = vmatpush.bf16.msra.mxu0 %v1412
      %1424 = vmatpush.bf16.msra.mxu0 %v1411
      %1425 = vmatpush.bf16.msra.mxu0 %v1410
      %1426 = vmatpush.bf16.msra.mxu0 %v1409
      %1427 = vmatpush.bf16.msra.mxu0 %v1408
      %1428 = vmatpush.bf16.msra.mxu0 %v1407
      %1429 = vmatpush.bf16.msra.mxu0 %v1406
      %1430 = vmatmul.bf16.gmra.mxu0 %v1356
      %v1431 = vpop.f32.mrf.mxu0
      %v1432 = vadd.f32 0.0, %v1431
      %v1433 = vpop.f32.mrf.mxu0
      %v1434 = vadd.f32 0.0, %v1433
      %1435 = vdwg.mxu0
      %v1436 = vadd.f32 %v1348, %v1432
      %v1437 = vadd.f32 %v1350, %v1434
      %s1438 = scalar_lea.vmem [#allocation3], 3
      %v1439 = vld [vmem:[%s1438] ss:$2 sm:$0xff]
      %s1440 = scalar_lea.vmem [#allocation3], 19
      %v1441 = vld [vmem:[%s1440] ss:$2 sm:$0xff]
      %v1442 = vpack.c.bf16 %v1441, %v1439
      %s1443 = scalar_lea.vmem %s1, 704
      %v1444 = vld [vmem:[%s1443] sm:$0xf]
      %v1445 = vld [vmem:[%s1443 + $0x4] sm:$0xf]
      %v1446 = vld [vmem:[%s1443 + $0x8] sm:$0xf]
      %v1447 = vld [vmem:[%s1443 + $0xc] sm:$0xf]
      %v1448 = vld [vmem:[%s1443 + $0x10] sm:$0xf]
      %v1449 = vld [vmem:[%s1443 + $0x14] sm:$0xf]
      %v1450 = vld [vmem:[%s1443 + $0x18] sm:$0xf]
      %v1451 = vld [vmem:[%s1443 + $0x1c] sm:$0xf]
      %v1452 = vld [vmem:[%s1443 + $0x20] sm:$0xf]
      %v1453 = vld [vmem:[%s1443 + $0x24] sm:$0xf]
      %v1454 = vld [vmem:[%s1443 + $0x28] sm:$0xf]
      %v1455 = vld [vmem:[%s1443 + $0x2c] sm:$0xf]
      %v1456 = vld [vmem:[%s1443 + $0x30] sm:$0xf]
      %v1457 = vld [vmem:[%s1443 + $0x34] sm:$0xf]
      %v1458 = vld [vmem:[%s1443 + $0x38] sm:$0xf]
      %v1459 = vld [vmem:[%s1443 + $0x3c] sm:$0xf]
      %v1476 = vunpack.c.l.b16 %v1444
      %v1477 = vunpack.c.l.b16 %v1445
      %v1478 = vunpack.c.l.b16 %v1446
      %v1479 = vunpack.c.l.b16 %v1447
      %v1480 = vunpack.c.l.b16 %v1448
      %v1481 = vunpack.c.l.b16 %v1449
      %v1482 = vunpack.c.l.b16 %v1450
      %v1483 = vunpack.c.l.b16 %v1451
      %v1484 = vunpack.c.l.b16 %v1452
      %v1485 = vunpack.c.l.b16 %v1453
      %v1486 = vunpack.c.l.b16 %v1454
      %v1487 = vunpack.c.l.b16 %v1455
      %v1488 = vunpack.c.l.b16 %v1456
      %v1489 = vunpack.c.l.b16 %v1457
      %v1490 = vunpack.c.l.b16 %v1458
      %v1491 = vunpack.c.l.b16 %v1459
      %v1492 = vpack.c.b16 %v1477, %v1476
      %v1493 = vpack.c.b16 %v1479, %v1478
      %v1494 = vpack.c.b16 %v1481, %v1480
      %v1495 = vpack.c.b16 %v1483, %v1482
      %v1496 = vpack.c.b16 %v1485, %v1484
      %v1497 = vpack.c.b16 %v1487, %v1486
      %v1498 = vpack.c.b16 %v1489, %v1488
      %v1499 = vpack.c.b16 %v1491, %v1490
      %1508 = vmatpush.bf16.msra.mxu0 %v1499
      %1509 = vmatpush.bf16.msra.mxu0 %v1498
      %1510 = vmatpush.bf16.msra.mxu0 %v1497
      %1511 = vmatpush.bf16.msra.mxu0 %v1496
      %1512 = vmatpush.bf16.msra.mxu0 %v1495
      %1513 = vmatpush.bf16.msra.mxu0 %v1494
      %1514 = vmatpush.bf16.msra.mxu0 %v1493
      %1515 = vmatpush.bf16.msra.mxu0 %v1492
      %1516 = vmatmul.bf16.gmra.mxu0 %v1442
      %v1517 = vpop.f32.mrf.mxu0
      %v1518 = vadd.f32 0.0, %v1517
      %v1519 = vpop.f32.mrf.mxu0
      %v1520 = vadd.f32 0.0, %v1519
      %1521 = vdwg.mxu0
      %v1522 = vadd.f32 %v1436, %v1518
      %v1523 = vadd.f32 %v1437, %v1520
      %v1524 = vld [vmem:[%s2 + $0x2] sm:$0x1]
      %v1525 = vperm.slane %v1524, 0
      %v1526 = vmul.f32 %v1522, %v1525
      %v1527 = vmul.f32 %v1523, %v1525
      %v1528 = vld [vmem:[%s3 + $0x2] sm:$0x1]
      %v1529 = vperm.slane %v1528, 0
      %v1530 = vadd.f32 %v1526, %v1529
      %v1531 = vadd.f32 %v1527, %v1529
      %vm1532 = vcmp.gt.f32.partialorder %v1530, 0.0
      %vm1533 = vcmp.gt.f32.partialorder %v1531, 0.0
      %v1534 = vmul.f32 %v1530, 0.2
      %v1535 = vmul.f32 %v1531, 0.2
      %v1536 = vsel %vm1532, %v1530, %v1534
      %v1537 = vsel %vm1533, %v1531, %v1535
      %1538 = vst [vmem:[#allocation2] sm:$0xff] 0.0
      %1539 = vst [vmem:[#allocation2 + $0x8] sm:$0xff] 0.0
      %1540 = vst [vmem:[#allocation2 + $0x10] sm:$0xff] 0.0
      %1541 = vst [vmem:[#allocation2 + $0x18] sm:$0xff] 0.0
      %1542 = vst [vmem:[#allocation2 + $0x20] sm:$0xff] 0.0
      %1543 = vst [vmem:[#allocation2 + $0x28] sm:$0xff] 0.0
      %1544 = vst [vmem:[#allocation2 + $0x30] sm:$0xff] 0.0
      %1545 = vst [vmem:[#allocation2 + $0x38] sm:$0xff] 0.0
      %1546 = vst [vmem:[#allocation2 + $0x40] sm:$0x3] 0.0
      %1547 = vst [vmem:[#allocation2 + $0x1] sm:$0xff] %v1536
      %1548 = vst [vmem:[#allocation2 + $0x9] sm:$0xff] %v1537
      %v1549 = vld [vmem:[#allocation2] ss:$2 sm:$0xff]
      %v1550 = vpack.c.bf16 %v1549, %v1549
      %s1551 = scalar_lea.vmem %s1, 768
      %v1552 = vld [vmem:[%s1551] sm:$0xf]
      %v1553 = vld [vmem:[%s1551 + $0x4] sm:$0xf]
      %v1554 = vld [vmem:[%s1551 + $0x8] sm:$0xf]
      %v1555 = vld [vmem:[%s1551 + $0xc] sm:$0xf]
      %v1556 = vld [vmem:[%s1551 + $0x10] sm:$0xf]
      %v1557 = vld [vmem:[%s1551 + $0x14] sm:$0xf]
      %v1558 = vld [vmem:[%s1551 + $0x18] sm:$0xf]
      %v1559 = vld [vmem:[%s1551 + $0x1c] sm:$0xf]
      %v1560 = vld [vmem:[%s1551 + $0x20] sm:$0xf]
      %v1561 = vld [vmem:[%s1551 + $0x24] sm:$0xf]
      %v1562 = vld [vmem:[%s1551 + $0x28] sm:$0xf]
      %v1563 = vld [vmem:[%s1551 + $0x2c] sm:$0xf]
      %v1564 = vld [vmem:[%s1551 + $0x30] sm:$0xf]
      %v1565 = vld [vmem:[%s1551 + $0x34] sm:$0xf]
      %v1566 = vld [vmem:[%s1551 + $0x38] sm:$0xf]
      %v1567 = vld [vmem:[%s1551 + $0x3c] sm:$0xf]
      %v1568 = vld [vmem:[%s791] ss:$2 sm:$0xff]
      %v1569 = vpack.c.bf16 %v1568, %v1568
      %s1570 = scalar_lea.vmem %s1, 832
      %v1571 = vld [vmem:[%s1570] sm:$0xf]
      %v1572 = vld [vmem:[%s1570 + $0x4] sm:$0xf]
      %v1573 = vld [vmem:[%s1570 + $0x8] sm:$0xf]
      %v1574 = vld [vmem:[%s1570 + $0xc] sm:$0xf]
      %v1575 = vld [vmem:[%s1570 + $0x10] sm:$0xf]
      %v1576 = vld [vmem:[%s1570 + $0x14] sm:$0xf]
      %v1577 = vld [vmem:[%s1570 + $0x18] sm:$0xf]
      %v1578 = vld [vmem:[%s1570 + $0x1c] sm:$0xf]
      %v1579 = vld [vmem:[%s1570 + $0x20] sm:$0xf]
      %v1580 = vld [vmem:[%s1570 + $0x24] sm:$0xf]
      %v1581 = vld [vmem:[%s1570 + $0x28] sm:$0xf]
      %v1582 = vld [vmem:[%s1570 + $0x2c] sm:$0xf]
      %v1583 = vld [vmem:[%s1570 + $0x30] sm:$0xf]
      %v1584 = vld [vmem:[%s1570 + $0x34] sm:$0xf]
      %v1585 = vld [vmem:[%s1570 + $0x38] sm:$0xf]
      %v1586 = vld [vmem:[%s1570 + $0x3c] sm:$0xf]
      %v1603 = vunpack.c.l.b16 %v1571
      %v1604 = vunpack.c.l.b16 %v1572
      %v1605 = vunpack.c.l.b16 %v1573
      %v1606 = vunpack.c.l.b16 %v1574
      %v1607 = vunpack.c.l.b16 %v1575
      %v1608 = vunpack.c.l.b16 %v1576
      %v1609 = vunpack.c.l.b16 %v1577
      %v1610 = vunpack.c.l.b16 %v1578
      %v1611 = vunpack.c.l.b16 %v1579
      %v1612 = vunpack.c.l.b16 %v1580
      %v1613 = vunpack.c.l.b16 %v1581
      %v1614 = vunpack.c.l.b16 %v1582
      %v1615 = vunpack.c.l.b16 %v1583
      %v1616 = vunpack.c.l.b16 %v1584
      %v1617 = vunpack.c.l.b16 %v1585
      %v1618 = vunpack.c.l.b16 %v1586
      %v1619 = vpack.c.b16 %v1604, %v1603
      %v1620 = vpack.c.b16 %v1606, %v1605
      %v1621 = vpack.c.b16 %v1608, %v1607
      %v1622 = vpack.c.b16 %v1610, %v1609
      %v1623 = vpack.c.b16 %v1612, %v1611
      %v1624 = vpack.c.b16 %v1614, %v1613
      %v1625 = vpack.c.b16 %v1616, %v1615
      %v1626 = vpack.c.b16 %v1618, %v1617
      %1635 = vmatpush.bf16.msra.mxu0 %v1626
      %1636 = vmatpush.bf16.msra.mxu0 %v1625
      %1637 = vmatpush.bf16.msra.mxu0 %v1624
      %1638 = vmatpush.bf16.msra.mxu0 %v1623
      %1639 = vmatpush.bf16.msra.mxu0 %v1622
      %1640 = vmatpush.bf16.msra.mxu0 %v1621
      %1641 = vmatpush.bf16.msra.mxu0 %v1620
      %1642 = vmatpush.bf16.msra.mxu0 %v1619
      %1643 = vmatmul.bf16.gmra.mxu0 %v1569
      %v1644 = vpop.f32.mrf.mxu0
      %v1645 = vadd.f32 0.0, %v1644
      %v1646 = vpop.f32.mrf.mxu0
      %1647 = vdwg.mxu0
      %v1664 = vunpack.c.l.b16 %v1552
      %v1665 = vunpack.c.l.b16 %v1553
      %v1666 = vunpack.c.l.b16 %v1554
      %v1667 = vunpack.c.l.b16 %v1555
      %v1668 = vunpack.c.l.b16 %v1556
      %v1669 = vunpack.c.l.b16 %v1557
      %v1670 = vunpack.c.l.b16 %v1558
      %v1671 = vunpack.c.l.b16 %v1559
      %v1672 = vunpack.c.l.b16 %v1560
      %v1673 = vunpack.c.l.b16 %v1561
      %v1674 = vunpack.c.l.b16 %v1562
      %v1675 = vunpack.c.l.b16 %v1563
      %v1676 = vunpack.c.l.b16 %v1564
      %v1677 = vunpack.c.l.b16 %v1565
      %v1678 = vunpack.c.l.b16 %v1566
      %v1679 = vunpack.c.l.b16 %v1567
      %v1680 = vpack.c.b16 %v1665, %v1664
      %v1681 = vpack.c.b16 %v1667, %v1666
      %v1682 = vpack.c.b16 %v1669, %v1668
      %v1683 = vpack.c.b16 %v1671, %v1670
      %v1684 = vpack.c.b16 %v1673, %v1672
      %v1685 = vpack.c.b16 %v1675, %v1674
      %v1686 = vpack.c.b16 %v1677, %v1676
      %v1687 = vpack.c.b16 %v1679, %v1678
      %1696 = vmatpush.bf16.msra.mxu0 %v1687
      %1697 = vmatpush.bf16.msra.mxu0 %v1686
      %1698 = vmatpush.bf16.msra.mxu0 %v1685
      %1699 = vmatpush.bf16.msra.mxu0 %v1684
      %1700 = vmatpush.bf16.msra.mxu0 %v1683
      %1701 = vmatpush.bf16.msra.mxu0 %v1682
      %1702 = vmatpush.bf16.msra.mxu0 %v1681
      %1703 = vmatpush.bf16.msra.mxu0 %v1680
      %1704 = vmatmul.bf16.gmra.mxu0 %v1550
      %v1705 = vpop.f32.mrf.mxu0
      %v1706 = vadd.f32 %v1645, %v1705
      %v1707 = vpop.f32.mrf.mxu0
      %1708 = vdwg.mxu0
      %s1709 = scalar_lea.vmem [#allocation2], 2
      %v1710 = vld [vmem:[%s1709] ss:$2 sm:$0xff]
      %v1711 = vpack.c.bf16 %v1710, %v1710
      %s1712 = scalar_lea.vmem %s1, 896
      %v1713 = vld [vmem:[%s1712] sm:$0xf]
      %v1714 = vld [vmem:[%s1712 + $0x4] sm:$0xf]
      %v1715 = vld [vmem:[%s1712 + $0x8] sm:$0xf]
      %v1716 = vld [vmem:[%s1712 + $0xc] sm:$0xf]
      %v1717 = vld [vmem:[%s1712 + $0x10] sm:$0xf]
      %v1718 = vld [vmem:[%s1712 + $0x14] sm:$0xf]
      %v1719 = vld [vmem:[%s1712 + $0x18] sm:$0xf]
      %v1720 = vld [vmem:[%s1712 + $0x1c] sm:$0xf]
      %v1721 = vld [vmem:[%s1712 + $0x20] sm:$0xf]
      %v1722 = vld [vmem:[%s1712 + $0x24] sm:$0xf]
      %v1723 = vld [vmem:[%s1712 + $0x28] sm:$0xf]
      %v1724 = vld [vmem:[%s1712 + $0x2c] sm:$0xf]
      %v1725 = vld [vmem:[%s1712 + $0x30] sm:$0xf]
      %v1726 = vld [vmem:[%s1712 + $0x34] sm:$0xf]
      %v1727 = vld [vmem:[%s1712 + $0x38] sm:$0xf]
      %v1728 = vld [vmem:[%s1712 + $0x3c] sm:$0xf]
      %v1745 = vunpack.c.l.b16 %v1713
      %v1746 = vunpack.c.l.b16 %v1714
      %v1747 = vunpack.c.l.b16 %v1715
      %v1748 = vunpack.c.l.b16 %v1716
      %v1749 = vunpack.c.l.b16 %v1717
      %v1750 = vunpack.c.l.b16 %v1718
      %v1751 = vunpack.c.l.b16 %v1719
      %v1752 = vunpack.c.l.b16 %v1720
      %v1753 = vunpack.c.l.b16 %v1721
      %v1754 = vunpack.c.l.b16 %v1722
      %v1755 = vunpack.c.l.b16 %v1723
      %v1756 = vunpack.c.l.b16 %v1724
      %v1757 = vunpack.c.l.b16 %v1725
      %v1758 = vunpack.c.l.b16 %v1726
      %v1759 = vunpack.c.l.b16 %v1727
      %v1760 = vunpack.c.l.b16 %v1728
      %v1761 = vpack.c.b16 %v1746, %v1745
      %v1762 = vpack.c.b16 %v1748, %v1747
      %v1763 = vpack.c.b16 %v1750, %v1749
      %v1764 = vpack.c.b16 %v1752, %v1751
      %v1765 = vpack.c.b16 %v1754, %v1753
      %v1766 = vpack.c.b16 %v1756, %v1755
      %v1767 = vpack.c.b16 %v1758, %v1757
      %v1768 = vpack.c.b16 %v1760, %v1759
      %1777 = vmatpush.bf16.msra.mxu0 %v1768
      %1778 = vmatpush.bf16.msra.mxu0 %v1767
      %1779 = vmatpush.bf16.msra.mxu0 %v1766
      %1780 = vmatpush.bf16.msra.mxu0 %v1765
      %1781 = vmatpush.bf16.msra.mxu0 %v1764
      %1782 = vmatpush.bf16.msra.mxu0 %v1763
      %1783 = vmatpush.bf16.msra.mxu0 %v1762
      %1784 = vmatpush.bf16.msra.mxu0 %v1761
      %1785 = vmatmul.bf16.gmra.mxu0 %v1711
      %v1786 = vpop.f32.mrf.mxu0
      %v1787 = vadd.f32 0.0, %v1786
      %v1788 = vpop.f32.mrf.mxu0
      %1789 = vdwg.mxu0
      %v1790 = vadd.f32 %v1706, %v1787
      %v1791 = vld [vmem:[%s1050] ss:$2 sm:$0xff]
      %v1792 = vpack.c.bf16 %v1791, %v1791
      %s1793 = scalar_lea.vmem %s1, 960
      %v1794 = vld [vmem:[%s1793] sm:$0xf]
      %v1795 = vld [vmem:[%s1793 + $0x4] sm:$0xf]
      %v1796 = vld [vmem:[%s1793 + $0x8] sm:$0xf]
      %v1797 = vld [vmem:[%s1793 + $0xc] sm:$0xf]
      %v1798 = vld [vmem:[%s1793 + $0x10] sm:$0xf]
      %v1799 = vld [vmem:[%s1793 + $0x14] sm:$0xf]
      %v1800 = vld [vmem:[%s1793 + $0x18] sm:$0xf]
      %v1801 = vld [vmem:[%s1793 + $0x1c] sm:$0xf]
      %v1802 = vld [vmem:[%s1793 + $0x20] sm:$0xf]
      %v1803 = vld [vmem:[%s1793 + $0x24] sm:$0xf]
      %v1804 = vld [vmem:[%s1793 + $0x28] sm:$0xf]
      %v1805 = vld [vmem:[%s1793 + $0x2c] sm:$0xf]
      %v1806 = vld [vmem:[%s1793 + $0x30] sm:$0xf]
      %v1807 = vld [vmem:[%s1793 + $0x34] sm:$0xf]
      %v1808 = vld [vmem:[%s1793 + $0x38] sm:$0xf]
      %v1809 = vld [vmem:[%s1793 + $0x3c] sm:$0xf]
      %v1826 = vunpack.c.l.b16 %v1794
      %v1827 = vunpack.c.l.b16 %v1795
      %v1828 = vunpack.c.l.b16 %v1796
      %v1829 = vunpack.c.l.b16 %v1797
      %v1830 = vunpack.c.l.b16 %v1798
      %v1831 = vunpack.c.l.b16 %v1799
      %v1832 = vunpack.c.l.b16 %v1800
      %v1833 = vunpack.c.l.b16 %v1801
      %v1834 = vunpack.c.l.b16 %v1802
      %v1835 = vunpack.c.l.b16 %v1803
      %v1836 = vunpack.c.l.b16 %v1804
      %v1837 = vunpack.c.l.b16 %v1805
      %v1838 = vunpack.c.l.b16 %v1806
      %v1839 = vunpack.c.l.b16 %v1807
      %v1840 = vunpack.c.l.b16 %v1808
      %v1841 = vunpack.c.l.b16 %v1809
      %v1842 = vpack.c.b16 %v1827, %v1826
      %v1843 = vpack.c.b16 %v1829, %v1828
      %v1844 = vpack.c.b16 %v1831, %v1830
      %v1845 = vpack.c.b16 %v1833, %v1832
      %v1846 = vpack.c.b16 %v1835, %v1834
      %v1847 = vpack.c.b16 %v1837, %v1836
      %v1848 = vpack.c.b16 %v1839, %v1838
      %v1849 = vpack.c.b16 %v1841, %v1840
      %1858 = vmatpush.bf16.msra.mxu0 %v1849
      %1859 = vmatpush.bf16.msra.mxu0 %v1848
      %1860 = vmatpush.bf16.msra.mxu0 %v1847
      %1861 = vmatpush.bf16.msra.mxu0 %v1846
      %1862 = vmatpush.bf16.msra.mxu0 %v1845
      %1863 = vmatpush.bf16.msra.mxu0 %v1844
      %1864 = vmatpush.bf16.msra.mxu0 %v1843
      %1865 = vmatpush.bf16.msra.mxu0 %v1842
      %1866 = vmatmul.bf16.gmra.mxu0 %v1792
      %v1867 = vpop.f32.mrf.mxu0
      %v1868 = vadd.f32 0.0, %v1867
      %v1869 = vpop.f32.mrf.mxu0
      %1870 = vdwg.mxu0
      %v1871 = vadd.f32 %v1790, %v1868
      %v1872 = vld [vmem:[%s2 + $0x3] sm:$0x1]
      %v1873 = vperm.slane %v1872, 0
      %v1874 = vmul.f32 %v1871, %v1873
      %v1875 = vld [vmem:[%s3 + $0x3] sm:$0x1]
      %v1876 = vperm.slane %v1875, 0
      %v1877 = vadd.f32 %v1874, %v1876
      %vm1878 = vcmp.gt.f32.partialorder %v1877, 0.0
      %v1879 = vmul.f32 %v1877, 0.2
      %v1880 = vsel %vm1878, %v1877, %v1879
      %1881 = vst [vmem:[#allocation3] sm:$0xff] 0.0
      %1882 = vst [vmem:[#allocation3 + $0x8] sm:$0xff] 0.0
      %1883 = vst [vmem:[#allocation3 + $0x10] sm:$0xff] 0.0
      %1884 = vst [vmem:[#allocation3 + $0x18] sm:$0xff] 0.0
      %1885 = vst [vmem:[#allocation3 + $0x20] sm:$0xff] 0.0
      %1886 = vst [vmem:[#allocation3 + $0x28] sm:$0xff] 0.0
      %1887 = vst [vmem:[#allocation3 + $0x30] sm:$0xff] 0.0
      %1888 = vst [vmem:[#allocation3 + $0x38] sm:$0xff] 0.0
      %1889 = vst [vmem:[#allocation3 + $0x40] sm:$0x3] 0.0
      %1890 = vst [vmem:[#allocation3 + $0x1] sm:$0xff] %v1880
      %v1891 = vld [vmem:[#allocation3] ss:$2 sm:$0xf]
      %v1892 = vpack.c.bf16 %v1891, %v1891
      %s1893 = scalar_lea.vmem %s1, 1024
      %v1894 = vld [vmem:[%s1893] sm:$0xf]
      %v1895 = vld [vmem:[%s1893 + $0x4] sm:$0xf]
      %v1896 = vld [vmem:[%s1893 + $0x8] sm:$0xf]
      %v1897 = vld [vmem:[%s1893 + $0xc] sm:$0xf]
      %v1898 = vld [vmem:[%s1893 + $0x10] sm:$0xf]
      %v1899 = vld [vmem:[%s1893 + $0x14] sm:$0xf]
      %v1900 = vld [vmem:[%s1893 + $0x18] sm:$0xf]
      %v1901 = vld [vmem:[%s1893 + $0x1c] sm:$0xf]
      %v1902 = vld [vmem:[%s1893 + $0x20] sm:$0xf]
      %v1903 = vld [vmem:[%s1893 + $0x24] sm:$0xf]
      %v1904 = vld [vmem:[%s1893 + $0x28] sm:$0xf]
      %v1905 = vld [vmem:[%s1893 + $0x2c] sm:$0xf]
      %v1906 = vld [vmem:[%s1893 + $0x30] sm:$0xf]
      %v1907 = vld [vmem:[%s1893 + $0x34] sm:$0xf]
      %v1908 = vld [vmem:[%s1893 + $0x38] sm:$0xf]
      %v1909 = vld [vmem:[%s1893 + $0x3c] sm:$0xf]
      %v1910 = vld [vmem:[%s1206] ss:$2 sm:$0xf]
      %v1911 = vpack.c.bf16 %v1910, %v1910
      %s1912 = scalar_lea.vmem %s1, 1088
      %v1913 = vld [vmem:[%s1912] sm:$0xf]
      %v1914 = vld [vmem:[%s1912 + $0x4] sm:$0xf]
      %v1915 = vld [vmem:[%s1912 + $0x8] sm:$0xf]
      %v1916 = vld [vmem:[%s1912 + $0xc] sm:$0xf]
      %v1917 = vld [vmem:[%s1912 + $0x10] sm:$0xf]
      %v1918 = vld [vmem:[%s1912 + $0x14] sm:$0xf]
      %v1919 = vld [vmem:[%s1912 + $0x18] sm:$0xf]
      %v1920 = vld [vmem:[%s1912 + $0x1c] sm:$0xf]
      %v1921 = vld [vmem:[%s1912 + $0x20] sm:$0xf]
      %v1922 = vld [vmem:[%s1912 + $0x24] sm:$0xf]
      %v1923 = vld [vmem:[%s1912 + $0x28] sm:$0xf]
      %v1924 = vld [vmem:[%s1912 + $0x2c] sm:$0xf]
      %v1925 = vld [vmem:[%s1912 + $0x30] sm:$0xf]
      %v1926 = vld [vmem:[%s1912 + $0x34] sm:$0xf]
      %v1927 = vld [vmem:[%s1912 + $0x38] sm:$0xf]
      %v1928 = vld [vmem:[%s1912 + $0x3c] sm:$0xf]
      %v1945 = vunpack.c.l.b16 %v1913
      %v1946 = vunpack.c.l.b16 %v1914
      %v1947 = vunpack.c.l.b16 %v1915
      %v1948 = vunpack.c.l.b16 %v1916
      %v1949 = vunpack.c.l.b16 %v1917
      %v1950 = vunpack.c.l.b16 %v1918
      %v1951 = vunpack.c.l.b16 %v1919
      %v1952 = vunpack.c.l.b16 %v1920
      %v1953 = vunpack.c.l.b16 %v1921
      %v1954 = vunpack.c.l.b16 %v1922
      %v1955 = vunpack.c.l.b16 %v1923
      %v1956 = vunpack.c.l.b16 %v1924
      %v1957 = vunpack.c.l.b16 %v1925
      %v1958 = vunpack.c.l.b16 %v1926
      %v1959 = vunpack.c.l.b16 %v1927
      %v1960 = vunpack.c.l.b16 %v1928
      %v1961 = vpack.c.b16 %v1946, %v1945
      %v1962 = vpack.c.b16 %v1948, %v1947
      %v1963 = vpack.c.b16 %v1950, %v1949
      %v1964 = vpack.c.b16 %v1952, %v1951
      %v1965 = vpack.c.b16 %v1954, %v1953
      %v1966 = vpack.c.b16 %v1956, %v1955
      %v1967 = vpack.c.b16 %v1958, %v1957
      %v1968 = vpack.c.b16 %v1960, %v1959
      %1977 = vmatpush.bf16.msra.mxu0 %v1968
      %1978 = vmatpush.bf16.msra.mxu0 %v1967
      %1979 = vmatpush.bf16.msra.mxu0 %v1966
      %1980 = vmatpush.bf16.msra.mxu0 %v1965
      %1981 = vmatpush.bf16.msra.mxu0 %v1964
      %1982 = vmatpush.bf16.msra.mxu0 %v1963
      %1983 = vmatpush.bf16.msra.mxu0 %v1962
      %1984 = vmatpush.bf16.msra.mxu0 %v1961
      %1985 = vmatmul.bf16.gmra.mxu0 %v1911
      %v1986 = vpop.f32.mrf.mxu0
      %v1987 = vadd.f32 0.0, %v1986
      %v1988 = vpop.f32.mrf.mxu0
      %1989 = vdwg.mxu0
      %v2006 = vunpack.c.l.b16 %v1894
      %v2007 = vunpack.c.l.b16 %v1895
      %v2008 = vunpack.c.l.b16 %v1896
      %v2009 = vunpack.c.l.b16 %v1897
      %v2010 = vunpack.c.l.b16 %v1898
      %v2011 = vunpack.c.l.b16 %v1899
      %v2012 = vunpack.c.l.b16 %v1900
      %v2013 = vunpack.c.l.b16 %v1901
      %v2014 = vunpack.c.l.b16 %v1902
      %v2015 = vunpack.c.l.b16 %v1903
      %v2016 = vunpack.c.l.b16 %v1904
      %v2017 = vunpack.c.l.b16 %v1905
      %v2018 = vunpack.c.l.b16 %v1906
      %v2019 = vunpack.c.l.b16 %v1907
      %v2020 = vunpack.c.l.b16 %v1908
      %v2021 = vunpack.c.l.b16 %v1909
      %v2022 = vpack.c.b16 %v2007, %v2006
      %v2023 = vpack.c.b16 %v2009, %v2008
      %v2024 = vpack.c.b16 %v2011, %v2010
      %v2025 = vpack.c.b16 %v2013, %v2012
      %v2026 = vpack.c.b16 %v2015, %v2014
      %v2027 = vpack.c.b16 %v2017, %v2016
      %v2028 = vpack.c.b16 %v2019, %v2018
      %v2029 = vpack.c.b16 %v2021, %v2020
      %2038 = vmatpush.bf16.msra.mxu0 %v2029
      %2039 = vmatpush.bf16.msra.mxu0 %v2028
      %2040 = vmatpush.bf16.msra.mxu0 %v2027
      %2041 = vmatpush.bf16.msra.mxu0 %v2026
      %2042 = vmatpush.bf16.msra.mxu0 %v2025
      %2043 = vmatpush.bf16.msra.mxu0 %v2024
      %2044 = vmatpush.bf16.msra.mxu0 %v2023
      %2045 = vmatpush.bf16.msra.mxu0 %v2022
      %2046 = vmatmul.bf16.gmra.mxu0 %v1892
      %v2047 = vpop.f32.mrf.mxu0
      %v2048 = vadd.f32 %v1987, %v2047
      %v2049 = vpop.f32.mrf.mxu0
      %2050 = vdwg.mxu0
      %v2051 = vld [vmem:[%s1352] ss:$2 sm:$0xf]
      %v2052 = vpack.c.bf16 %v2051, %v2051
      %s2053 = scalar_lea.vmem %s1, 1152
      %v2054 = vld [vmem:[%s2053] sm:$0xf]
      %v2055 = vld [vmem:[%s2053 + $0x4] sm:$0xf]
      %v2056 = vld [vmem:[%s2053 + $0x8] sm:$0xf]
      %v2057 = vld [vmem:[%s2053 + $0xc] sm:$0xf]
      %v2058 = vld [vmem:[%s2053 + $0x10] sm:$0xf]
      %v2059 = vld [vmem:[%s2053 + $0x14] sm:$0xf]
      %v2060 = vld [vmem:[%s2053 + $0x18] sm:$0xf]
      %v2061 = vld [vmem:[%s2053 + $0x1c] sm:$0xf]
      %v2062 = vld [vmem:[%s2053 + $0x20] sm:$0xf]
      %v2063 = vld [vmem:[%s2053 + $0x24] sm:$0xf]
      %v2064 = vld [vmem:[%s2053 + $0x28] sm:$0xf]
      %v2065 = vld [vmem:[%s2053 + $0x2c] sm:$0xf]
      %v2066 = vld [vmem:[%s2053 + $0x30] sm:$0xf]
      %v2067 = vld [vmem:[%s2053 + $0x34] sm:$0xf]
      %v2068 = vld [vmem:[%s2053 + $0x38] sm:$0xf]
      %v2069 = vld [vmem:[%s2053 + $0x3c] sm:$0xf]
      %v2086 = vunpack.c.l.b16 %v2054
      %v2087 = vunpack.c.l.b16 %v2055
      %v2088 = vunpack.c.l.b16 %v2056
      %v2089 = vunpack.c.l.b16 %v2057
      %v2090 = vunpack.c.l.b16 %v2058
      %v2091 = vunpack.c.l.b16 %v2059
      %v2092 = vunpack.c.l.b16 %v2060
      %v2093 = vunpack.c.l.b16 %v2061
      %v2094 = vunpack.c.l.b16 %v2062
      %v2095 = vunpack.c.l.b16 %v2063
      %v2096 = vunpack.c.l.b16 %v2064
      %v2097 = vunpack.c.l.b16 %v2065
      %v2098 = vunpack.c.l.b16 %v2066
      %v2099 = vunpack.c.l.b16 %v2067
      %v2100 = vunpack.c.l.b16 %v2068
      %v2101 = vunpack.c.l.b16 %v2069
      %v2102 = vpack.c.b16 %v2087, %v2086
      %v2103 = vpack.c.b16 %v2089, %v2088
      %v2104 = vpack.c.b16 %v2091, %v2090
      %v2105 = vpack.c.b16 %v2093, %v2092
      %v2106 = vpack.c.b16 %v2095, %v2094
      %v2107 = vpack.c.b16 %v2097, %v2096
      %v2108 = vpack.c.b16 %v2099, %v2098
      %v2109 = vpack.c.b16 %v2101, %v2100
      %2118 = vmatpush.bf16.msra.mxu0 %v2109
      %2119 = vmatpush.bf16.msra.mxu0 %v2108
      %2120 = vmatpush.bf16.msra.mxu0 %v2107
      %2121 = vmatpush.bf16.msra.mxu0 %v2106
      %2122 = vmatpush.bf16.msra.mxu0 %v2105
      %2123 = vmatpush.bf16.msra.mxu0 %v2104
      %2124 = vmatpush.bf16.msra.mxu0 %v2103
      %2125 = vmatpush.bf16.msra.mxu0 %v2102
      %2126 = vmatmul.bf16.gmra.mxu0 %v2052
      %v2127 = vpop.f32.mrf.mxu0
      %v2128 = vadd.f32 0.0, %v2127
      %v2129 = vpop.f32.mrf.mxu0
      %2130 = vdwg.mxu0
      %v2131 = vadd.f32 %v2048, %v2128
      %v2132 = vld [vmem:[%s1438] ss:$2 sm:$0xf]
      %v2133 = vpack.c.bf16 %v2132, %v2132
      %s2134 = scalar_lea.vmem %s1, 1216
      %v2135 = vld [vmem:[%s2134] sm:$0xf]
      %v2136 = vld [vmem:[%s2134 + $0x4] sm:$0xf]
      %v2137 = vld [vmem:[%s2134 + $0x8] sm:$0xf]
      %v2138 = vld [vmem:[%s2134 + $0xc] sm:$0xf]
      %v2139 = vld [vmem:[%s2134 + $0x10] sm:$0xf]
      %v2140 = vld [vmem:[%s2134 + $0x14] sm:$0xf]
      %v2141 = vld [vmem:[%s2134 + $0x18] sm:$0xf]
      %v2142 = vld [vmem:[%s2134 + $0x1c] sm:$0xf]
      %v2143 = vld [vmem:[%s2134 + $0x20] sm:$0xf]
      %v2144 = vld [vmem:[%s2134 + $0x24] sm:$0xf]
      %v2145 = vld [vmem:[%s2134 + $0x28] sm:$0xf]
      %v2146 = vld [vmem:[%s2134 + $0x2c] sm:$0xf]
      %v2147 = vld [vmem:[%s2134 + $0x30] sm:$0xf]
      %v2148 = vld [vmem:[%s2134 + $0x34] sm:$0xf]
      %v2149 = vld [vmem:[%s2134 + $0x38] sm:$0xf]
      %v2150 = vld [vmem:[%s2134 + $0x3c] sm:$0xf]
      %v2167 = vunpack.c.l.b16 %v2135
      %v2168 = vunpack.c.l.b16 %v2136
      %v2169 = vunpack.c.l.b16 %v2137
      %v2170 = vunpack.c.l.b16 %v2138
      %v2171 = vunpack.c.l.b16 %v2139
      %v2172 = vunpack.c.l.b16 %v2140
      %v2173 = vunpack.c.l.b16 %v2141
      %v2174 = vunpack.c.l.b16 %v2142
      %v2175 = vunpack.c.l.b16 %v2143
      %v2176 = vunpack.c.l.b16 %v2144
      %v2177 = vunpack.c.l.b16 %v2145
      %v2178 = vunpack.c.l.b16 %v2146
      %v2179 = vunpack.c.l.b16 %v2147
      %v2180 = vunpack.c.l.b16 %v2148
      %v2181 = vunpack.c.l.b16 %v2149
      %v2182 = vunpack.c.l.b16 %v2150
      %v2183 = vpack.c.b16 %v2168, %v2167
      %v2184 = vpack.c.b16 %v2170, %v2169
      %v2185 = vpack.c.b16 %v2172, %v2171
      %v2186 = vpack.c.b16 %v2174, %v2173
      %v2187 = vpack.c.b16 %v2176, %v2175
      %v2188 = vpack.c.b16 %v2178, %v2177
      %v2189 = vpack.c.b16 %v2180, %v2179
      %v2190 = vpack.c.b16 %v2182, %v2181
      %2199 = vmatpush.bf16.msra.mxu0 %v2190
      %2200 = vmatpush.bf16.msra.mxu0 %v2189
      %2201 = vmatpush.bf16.msra.mxu0 %v2188
      %2202 = vmatpush.bf16.msra.mxu0 %v2187
      %2203 = vmatpush.bf16.msra.mxu0 %v2186
      %2204 = vmatpush.bf16.msra.mxu0 %v2185
      %2205 = vmatpush.bf16.msra.mxu0 %v2184
      %2206 = vmatpush.bf16.msra.mxu0 %v2183
      %2207 = vmatmul.bf16.gmra.mxu0 %v2133
      %v2208 = vpop.f32.mrf.mxu0
      %v2209 = vadd.f32 0.0, %v2208
      %v2210 = vpop.f32.mrf.mxu0
      %2211 = vdwg.mxu0
      %v2212 = vadd.f32 %v2131, %v2209
      %v2213 = vld [vmem:[%s2 + $0x4] sm:$0x1]
      %v2214 = vperm.slane %v2213, 0
      %v2215 = vmul.f32 %v2212, %v2214
      %v2216 = vld [vmem:[%s3 + $0x4] sm:$0x1]
      %v2217 = vperm.slane %v2216, 0
      %v2218 = vadd.f32 %v2215, %v2217
      %vm2219 = vcmp.gt.f32.partialorder %v2218, 0.0
      %v2220 = vmul.f32 %v2218, 0.2
      %v2221 = vsel %vm2219, %v2218, %v2220
      %2222 = vst [vmem:[#allocation2] sm:$0xff] 0.0
      %2223 = vst [vmem:[#allocation2 + $0x8] sm:$0xff] 0.0
      %2224 = vst [vmem:[#allocation2 + $0x10] sm:$0xff] 0.0
      %2225 = vst [vmem:[#allocation2 + $0x18] sm:$0xff] 0.0
      %2226 = vst [vmem:[#allocation2 + $0x20] sm:$0xff] 0.0
      %2227 = vst [vmem:[#allocation2 + $0x28] sm:$0xff] 0.0
      %2228 = vst [vmem:[#allocation2 + $0x30] sm:$0xff] 0.0
      %2229 = vst [vmem:[#allocation2 + $0x38] sm:$0xff] 0.0
      %2230 = vst [vmem:[#allocation2 + $0x40] sm:$0x3] 0.0
      %2231 = vst [vmem:[#allocation2 + $0x1] sm:$0xf] %v2221
      %2232 = vst [vmem:[%s230] sm:$0xf] %v2221
      %v2233 = vld [vmem:[#allocation2 + $0x1] sm:$0x1]
      %v2234 = vpack.c.bf16 %v2233, %v2233
      %s2235 = scalar_lea.vmem %s1, 1280
      %v2236 = vld [vmem:[%s2235] sm:$0xf]
      %v2237 = vld [vmem:[%s2235 + $0x4] sm:$0xf]
      %v2238 = vld [vmem:[%s2235 + $0x8] sm:$0xf]
      %v2239 = vld [vmem:[%s2235 + $0xc] sm:$0xf]
      %v2240 = vld [vmem:[%s2235 + $0x10] sm:$0xf]
      %v2241 = vld [vmem:[%s2235 + $0x14] sm:$0xf]
      %v2242 = vld [vmem:[%s2235 + $0x18] sm:$0xf]
      %v2243 = vld [vmem:[%s2235 + $0x1c] sm:$0xf]
      %v2244 = vld [vmem:[%s2235 + $0x20] sm:$0xf]
      %v2245 = vld [vmem:[%s2235 + $0x24] sm:$0xf]
      %v2246 = vld [vmem:[%s2235 + $0x28] sm:$0xf]
      %v2247 = vld [vmem:[%s2235 + $0x2c] sm:$0xf]
      %v2248 = vld [vmem:[%s2235 + $0x30] sm:$0xf]
      %v2249 = vld [vmem:[%s2235 + $0x34] sm:$0xf]
      %v2250 = vld [vmem:[%s2235 + $0x38] sm:$0xf]
      %v2251 = vld [vmem:[%s2235 + $0x3c] sm:$0xf]
      %v2252 = vld [vmem:[#allocation2 + $0x2] sm:$0x1]
      %v2253 = vpack.c.bf16 %v2252, %v2252
      %s2254 = scalar_lea.vmem %s1, 1344
      %v2255 = vld [vmem:[%s2254] sm:$0xf]
      %v2256 = vld [vmem:[%s2254 + $0x4] sm:$0xf]
      %v2257 = vld [vmem:[%s2254 + $0x8] sm:$0xf]
      %v2258 = vld [vmem:[%s2254 + $0xc] sm:$0xf]
      %v2259 = vld [vmem:[%s2254 + $0x10] sm:$0xf]
      %v2260 = vld [vmem:[%s2254 + $0x14] sm:$0xf]
      %v2261 = vld [vmem:[%s2254 + $0x18] sm:$0xf]
      %v2262 = vld [vmem:[%s2254 + $0x1c] sm:$0xf]
      %v2263 = vld [vmem:[%s2254 + $0x20] sm:$0xf]
      %v2264 = vld [vmem:[%s2254 + $0x24] sm:$0xf]
      %v2265 = vld [vmem:[%s2254 + $0x28] sm:$0xf]
      %v2266 = vld [vmem:[%s2254 + $0x2c] sm:$0xf]
      %v2267 = vld [vmem:[%s2254 + $0x30] sm:$0xf]
      %v2268 = vld [vmem:[%s2254 + $0x34] sm:$0xf]
      %v2269 = vld [vmem:[%s2254 + $0x38] sm:$0xf]
      %v2270 = vld [vmem:[%s2254 + $0x3c] sm:$0xf]
      %v2287 = vunpack.c.l.b16 %v2255
      %v2288 = vunpack.c.l.b16 %v2256
      %v2289 = vunpack.c.l.b16 %v2257
      %v2290 = vunpack.c.l.b16 %v2258
      %v2291 = vunpack.c.l.b16 %v2259
      %v2292 = vunpack.c.l.b16 %v2260
      %v2293 = vunpack.c.l.b16 %v2261
      %v2294 = vunpack.c.l.b16 %v2262
      %v2295 = vunpack.c.l.b16 %v2263
      %v2296 = vunpack.c.l.b16 %v2264
      %v2297 = vunpack.c.l.b16 %v2265
      %v2298 = vunpack.c.l.b16 %v2266
      %v2299 = vunpack.c.l.b16 %v2267
      %v2300 = vunpack.c.l.b16 %v2268
      %v2301 = vunpack.c.l.b16 %v2269
      %v2302 = vunpack.c.l.b16 %v2270
      %v2303 = vpack.c.b16 %v2288, %v2287
      %v2304 = vpack.c.b16 %v2290, %v2289
      %v2305 = vpack.c.b16 %v2292, %v2291
      %v2306 = vpack.c.b16 %v2294, %v2293
      %v2307 = vpack.c.b16 %v2296, %v2295
      %v2308 = vpack.c.b16 %v2298, %v2297
      %v2309 = vpack.c.b16 %v2300, %v2299
      %v2310 = vpack.c.b16 %v2302, %v2301
      %2319 = vmatpush.bf16.msra.mxu0 %v2310
      %2320 = vmatpush.bf16.msra.mxu0 %v2309
      %2321 = vmatpush.bf16.msra.mxu0 %v2308
      %2322 = vmatpush.bf16.msra.mxu0 %v2307
      %2323 = vmatpush.bf16.msra.mxu0 %v2306
      %2324 = vmatpush.bf16.msra.mxu0 %v2305
      %2325 = vmatpush.bf16.msra.mxu0 %v2304
      %2326 = vmatpush.bf16.msra.mxu0 %v2303
      %2327 = vmatmul.bf16.gmra.mxu0 %v2253
      %v2328 = vpop.f32.mrf.mxu0
      %v2329 = vadd.f32 0.0, %v2328
      %v2330 = vpop.f32.mrf.mxu0
      %2331 = vdwg.mxu0
      %v2348 = vunpack.c.l.b16 %v2236
      %v2349 = vunpack.c.l.b16 %v2237
      %v2350 = vunpack.c.l.b16 %v2238
      %v2351 = vunpack.c.l.b16 %v2239
      %v2352 = vunpack.c.l.b16 %v2240
      %v2353 = vunpack.c.l.b16 %v2241
      %v2354 = vunpack.c.l.b16 %v2242
      %v2355 = vunpack.c.l.b16 %v2243
      %v2356 = vunpack.c.l.b16 %v2244
      %v2357 = vunpack.c.l.b16 %v2245
      %v2358 = vunpack.c.l.b16 %v2246
      %v2359 = vunpack.c.l.b16 %v2247
      %v2360 = vunpack.c.l.b16 %v2248
      %v2361 = vunpack.c.l.b16 %v2249
      %v2362 = vunpack.c.l.b16 %v2250
      %v2363 = vunpack.c.l.b16 %v2251
      %v2364 = vpack.c.b16 %v2349, %v2348
      %v2365 = vpack.c.b16 %v2351, %v2350
      %v2366 = vpack.c.b16 %v2353, %v2352
      %v2367 = vpack.c.b16 %v2355, %v2354
      %v2368 = vpack.c.b16 %v2357, %v2356
      %v2369 = vpack.c.b16 %v2359, %v2358
      %v2370 = vpack.c.b16 %v2361, %v2360
      %v2371 = vpack.c.b16 %v2363, %v2362
      %2380 = vmatpush.bf16.msra.mxu0 %v2371
      %2381 = vmatpush.bf16.msra.mxu0 %v2370
      %2382 = vmatpush.bf16.msra.mxu0 %v2369
      %2383 = vmatpush.bf16.msra.mxu0 %v2368
      %2384 = vmatpush.bf16.msra.mxu0 %v2367
      %2385 = vmatpush.bf16.msra.mxu0 %v2366
      %2386 = vmatpush.bf16.msra.mxu0 %v2365
      %2387 = vmatpush.bf16.msra.mxu0 %v2364
      %2388 = vmatmul.bf16.gmra.mxu0 %v2234
      %v2389 = vpop.f32.mrf.mxu0
      %v2390 = vadd.f32 %v2329, %v2389
      %v2391 = vpop.f32.mrf.mxu0
      %2392 = vdwg.mxu0
      %v2393 = vld [vmem:[#allocation2 + $0x3] sm:$0x1]
      %v2394 = vpack.c.bf16 %v2393, %v2393
      %s2395 = scalar_lea.vmem %s1, 1408
      %v2396 = vld [vmem:[%s2395] sm:$0xf]
      %v2397 = vld [vmem:[%s2395 + $0x4] sm:$0xf]
      %v2398 = vld [vmem:[%s2395 + $0x8] sm:$0xf]
      %v2399 = vld [vmem:[%s2395 + $0xc] sm:$0xf]
      %v2400 = vld [vmem:[%s2395 + $0x10] sm:$0xf]
      %v2401 = vld [vmem:[%s2395 + $0x14] sm:$0xf]
      %v2402 = vld [vmem:[%s2395 + $0x18] sm:$0xf]
      %v2403 = vld [vmem:[%s2395 + $0x1c] sm:$0xf]
      %v2404 = vld [vmem:[%s2395 + $0x20] sm:$0xf]
      %v2405 = vld [vmem:[%s2395 + $0x24] sm:$0xf]
      %v2406 = vld [vmem:[%s2395 + $0x28] sm:$0xf]
      %v2407 = vld [vmem:[%s2395 + $0x2c] sm:$0xf]
      %v2408 = vld [vmem:[%s2395 + $0x30] sm:$0xf]
      %v2409 = vld [vmem:[%s2395 + $0x34] sm:$0xf]
      %v2410 = vld [vmem:[%s2395 + $0x38] sm:$0xf]
      %v2411 = vld [vmem:[%s2395 + $0x3c] sm:$0xf]
      %v2428 = vunpack.c.l.b16 %v2396
      %v2429 = vunpack.c.l.b16 %v2397
      %v2430 = vunpack.c.l.b16 %v2398
      %v2431 = vunpack.c.l.b16 %v2399
      %v2432 = vunpack.c.l.b16 %v2400
      %v2433 = vunpack.c.l.b16 %v2401
      %v2434 = vunpack.c.l.b16 %v2402
      %v2435 = vunpack.c.l.b16 %v2403
      %v2436 = vunpack.c.l.b16 %v2404
      %v2437 = vunpack.c.l.b16 %v2405
      %v2438 = vunpack.c.l.b16 %v2406
      %v2439 = vunpack.c.l.b16 %v2407
      %v2440 = vunpack.c.l.b16 %v2408
      %v2441 = vunpack.c.l.b16 %v2409
      %v2442 = vunpack.c.l.b16 %v2410
      %v2443 = vunpack.c.l.b16 %v2411
      %v2444 = vpack.c.b16 %v2429, %v2428
      %v2445 = vpack.c.b16 %v2431, %v2430
      %v2446 = vpack.c.b16 %v2433, %v2432
      %v2447 = vpack.c.b16 %v2435, %v2434
      %v2448 = vpack.c.b16 %v2437, %v2436
      %v2449 = vpack.c.b16 %v2439, %v2438
      %v2450 = vpack.c.b16 %v2441, %v2440
      %v2451 = vpack.c.b16 %v2443, %v2442
      %2460 = vmatpush.bf16.msra.mxu0 %v2451
      %2461 = vmatpush.bf16.msra.mxu0 %v2450
      %2462 = vmatpush.bf16.msra.mxu0 %v2449
      %2463 = vmatpush.bf16.msra.mxu0 %v2448
      %2464 = vmatpush.bf16.msra.mxu0 %v2447
      %2465 = vmatpush.bf16.msra.mxu0 %v2446
      %2466 = vmatpush.bf16.msra.mxu0 %v2445
      %2467 = vmatpush.bf16.msra.mxu0 %v2444
      %2468 = vmatmul.bf16.gmra.mxu0 %v2394
      %v2469 = vpop.f32.mrf.mxu0
      %v2470 = vadd.f32 0.0, %v2469
      %v2471 = vpop.f32.mrf.mxu0
      %2472 = vdwg.mxu0
      %v2473 = vadd.f32 %v2390, %v2470
      %v2474 = vld [vmem:[#allocation2 + $0x4] sm:$0x1]
      %v2475 = vpack.c.bf16 %v2474, %v2474
      %s2476 = scalar_lea.vmem %s1, 1472
      %v2477 = vld [vmem:[%s2476] sm:$0xf]
      %v2478 = vld [vmem:[%s2476 + $0x4] sm:$0xf]
      %v2479 = vld [vmem:[%s2476 + $0x8] sm:$0xf]
      %v2480 = vld [vmem:[%s2476 + $0xc] sm:$0xf]
      %v2481 = vld [vmem:[%s2476 + $0x10] sm:$0xf]
      %v2482 = vld [vmem:[%s2476 + $0x14] sm:$0xf]
      %v2483 = vld [vmem:[%s2476 + $0x18] sm:$0xf]
      %v2484 = vld [vmem:[%s2476 + $0x1c] sm:$0xf]
      %v2485 = vld [vmem:[%s2476 + $0x20] sm:$0xf]
      %v2486 = vld [vmem:[%s2476 + $0x24] sm:$0xf]
      %v2487 = vld [vmem:[%s2476 + $0x28] sm:$0xf]
      %v2488 = vld [vmem:[%s2476 + $0x2c] sm:$0xf]
      %v2489 = vld [vmem:[%s2476 + $0x30] sm:$0xf]
      %v2490 = vld [vmem:[%s2476 + $0x34] sm:$0xf]
      %v2491 = vld [vmem:[%s2476 + $0x38] sm:$0xf]
      %v2492 = vld [vmem:[%s2476 + $0x3c] sm:$0xf]
      %v2509 = vunpack.c.l.b16 %v2477
      %v2510 = vunpack.c.l.b16 %v2478
      %v2511 = vunpack.c.l.b16 %v2479
      %v2512 = vunpack.c.l.b16 %v2480
      %v2513 = vunpack.c.l.b16 %v2481
      %v2514 = vunpack.c.l.b16 %v2482
      %v2515 = vunpack.c.l.b16 %v2483
      %v2516 = vunpack.c.l.b16 %v2484
      %v2517 = vunpack.c.l.b16 %v2485
      %v2518 = vunpack.c.l.b16 %v2486
      %v2519 = vunpack.c.l.b16 %v2487
      %v2520 = vunpack.c.l.b16 %v2488
      %v2521 = vunpack.c.l.b16 %v2489
      %v2522 = vunpack.c.l.b16 %v2490
      %v2523 = vunpack.c.l.b16 %v2491
      %v2524 = vunpack.c.l.b16 %v2492
      %v2525 = vpack.c.b16 %v2510, %v2509
      %v2526 = vpack.c.b16 %v2512, %v2511
      %v2527 = vpack.c.b16 %v2514, %v2513
      %v2528 = vpack.c.b16 %v2516, %v2515
      %v2529 = vpack.c.b16 %v2518, %v2517
      %v2530 = vpack.c.b16 %v2520, %v2519
      %v2531 = vpack.c.b16 %v2522, %v2521
      %v2532 = vpack.c.b16 %v2524, %v2523
      %2541 = vmatpush.bf16.msra.mxu0 %v2532
      %2542 = vmatpush.bf16.msra.mxu0 %v2531
      %2543 = vmatpush.bf16.msra.mxu0 %v2530
      %2544 = vmatpush.bf16.msra.mxu0 %v2529
      %2545 = vmatpush.bf16.msra.mxu0 %v2528
      %2546 = vmatpush.bf16.msra.mxu0 %v2527
      %2547 = vmatpush.bf16.msra.mxu0 %v2526
      %2548 = vmatpush.bf16.msra.mxu0 %v2525
      %2549 = vmatmul.bf16.gmra.mxu0 %v2475
      %v2550 = vpop.f32.mrf.mxu0
      %v2551 = vadd.f32 0.0, %v2550
      %v2552 = vpop.f32.mrf.mxu0
      %2553 = vdwg.mxu0
      %v2554 = vadd.f32 %v2473, %v2551
      %v2555 = vld [vmem:[%s3 + $0x5] sm:$0x1]
      %v2556 = vadd.f32 %v2554, %v2555
      %v2557 = vmax.f32 %v2556, -30.0
      %v2558 = vmin.f32 %v2557, 30.0
      %v2559 = vsub.f32 0.0, %v2558
      %v2560 = vmul.f32 %v2559, 1.442695
      %v2561 = vpow.pop %v2560
      %v2562 = vadd.f32 %v2561, 1.0
      %v2563 = vrcp.pop %v2562
      %2564 = vst [vmem:[%s233] sm:$0x1] %v2563
      %p2565 = scmp.lt.s32.totalorder %s17, 1
      %s2566 = scalar_select %p2565, %s17, 1
      %s2567 = smul.addr %s2566, 4
      %s2568 = scalar_lea.vmem %s4, %s2567
      %p2569 = scmp.lt.s32.totalorder %s17, 1
      %s2570 = scalar_select %p2569, %s17, 1
      %s2571 = scalar_lea.vmem %s5, %s2570
      // Predicated region
      $region37: #{discriminator_latent_forward.1} parent=35 // pred_check
        %p2572 = pneg %p124
      $region38: #{discriminator_latent_forward.1} parent=35 // pred_check_branch
        %2574 = sbr.rel (%p2572) target = $region40
      $region39: #{discriminator_latent_forward.1} parent=35 // pred_region
        _
      $region40: #{discriminator_latent_forward.1} parent=35 // pred_fallthru
        _
      // Predicated region
      $region41: #{discriminator_latent_forward.1} parent=35 // pred_check
        %p2575 = pneg %p150
      $region42: #{discriminator_latent_forward.1} parent=35 // pred_check_branch
        %2577 = sbr.rel (%p2575) target = $region44
      $region43: #{discriminator_latent_forward.1} parent=35 // pred_region
        _
      $region44: #{discriminator_latent_forward.1} parent=35 // pred_fallthru
        _
    $region36: #{discriminator_latent_forward.1} parent=5 // pred_fallthru
      _
    %p2578 = scmp.le.s32.totalorder 2, %s12
    // Predicated region
    $region45: #{discriminator_latent_forward.1} parent=5 // pred_check
      %p2579 = pneg %p2578
    $region46: #{discriminator_latent_forward.1} parent=5 // pred_check_branch
      %2581 = sbr.rel (%p2579) target = $region48
    $region47: #{discriminator_latent_forward.1} parent=5 // pred_region
      %s2582 = ssub.s32 %s12, 2
      // Predicated region
      $region49: #{discriminator_latent_forward.1} parent=47 // pred_check
        %p2583 = pneg %p130
      $region50: #{discriminator_latent_forward.1} parent=47 // pred_check_branch
        %2585 = sbr.rel (%p2583) target = $region52
      $region51: #{discriminator_latent_forward.1} parent=47 // pred_region
        %p2586 = scmp.lt.s32.totalorder %s18, 1
        %s2587 = scalar_select %p2586, %s18, 1
        %s2588 = smul.addr %s2587, 4
        %s2589 = scalar_lea.vmem %s4, %s2588
      $region52: #{discriminator_latent_forward.1} parent=47 // pred_fallthru
        _
      // Predicated region
      $region53: #{discriminator_latent_forward.1} parent=47 // pred_check
        %p2590 = pneg %p156
      $region54: #{discriminator_latent_forward.1} parent=47 // pred_check_branch
        %2592 = sbr.rel (%p2590) target = $region56
      $region55: #{discriminator_latent_forward.1} parent=47 // pred_region
        %p2593 = scmp.lt.s32.totalorder %s18, 1
        %s2594 = scalar_select %p2593, %s18, 1
        %s2595 = scalar_lea.vmem %s5, %s2594
      $region56: #{discriminator_latent_forward.1} parent=47 // pred_fallthru
        _
    $region48: #{discriminator_latent_forward.1} parent=5 // pred_fallthru
      _
  $region6: #{discriminator_latent_forward.1} parent=0 // loop_footer
    %s16 = sadd.s32 1, %s12
  $region7: #{discriminator_latent_forward.1} parent=0 // loop_footer_branch
    %11 = sbr.rel target = $region3
  $region8: #{discriminator_latent_forward.1} parent=0 // loop_exit
    _

</llo_original>
